<compile_context>
chip_gen: v7x
topology: tpu7x:2x2x1
jax: 0.10.0
libtpu: 0.0.40
codegen_flags: <defaults>
</compile_context>

<pallas_src>
import math

import jax
import jax.numpy as jnp
from jax.experimental import pallas as pl
from jax.experimental.pallas import tpu as pltpu

# ----------------------------- config (small) -------------------------------
VOCAB = 100
MAX_POS = 16
B = 2            # batch (number of sentences)
S = 8            # sequence length
H = 32           # real hidden size (stand-in for 768)
NH = 2           # attention heads
HD = H // NH     # per-head dim (16) -- NOT padded any more
FFN = 64         # FFN intermediate size -- NOT padded any more
LAYERS = 2
LN_EPS = 1e-12

HP = 128         # hidden padded to one full lane tile (activations lane-dense)
QKVP = 128       # 3*H = 96 padded up to one lane tile for the fused QKV matmul
NVEC = 8         # packed per-layer vectors: bqkv, bo, ln1_g, ln1_b, b1, b2, ln2_g, ln2_b
assert 3 * H <= QKVP


# ------------------------------- fused kernel --------------------------------
def fused_encoder_kernel(mask_ref, x_ref, embln_ref,
                         wqkv_ref, wo_ref, w1_ref, w2_ref, vec_ref,
                         out_ref, xs_ref):
    f32 = jnp.float32
    bf16 = jnp.bfloat16
    l = pl.program_id(1)

    # lane mask selecting the H real hidden lanes out of HP padded lanes
    lane = jax.lax.broadcasted_iota(jnp.int32, (1, HP), 1)
    h_mask = (lane < H).astype(f32)

    def layer_norm(x, g, b):
        # x's padded lanes are exactly zero by construction -> no pre-mask mul
        mu = jnp.sum(x, axis=-1, keepdims=True) * (1.0 / H)
        d = (x - mu) * h_mask
        var = jnp.sum(d * d, axis=-1, keepdims=True) * (1.0 / H)
        return d * jax.lax.rsqrt(var + LN_EPS) * g + b

    # ---- first layer of this sentence: embedding LayerNorm into scratch ----
    @pl.when(l == 0)
    def _():
        eln = embln_ref[...]                          # (2, HP): gamma, beta
        xs_ref[...] = layer_norm(x_ref[0].astype(f32), eln[0:1], eln[1:2])

    x = xs_ref[...]                                   # (S, HP) f32

    # additive attention bias built in-kernel from the key padding mask
    m = mask_ref[0]                                   # (1, S) f32
    bias = jnp.where(jnp.broadcast_to(m, (S, S)) > 0.5, 0.0, -1e9).astype(f32)

    wqkv = wqkv_ref[0]                                # (HP, QKVP) bf16
    wo = wo_ref[0]                                    # (H, HP)   bf16
    w1 = w1_ref[0]                                    # (HP, FFN) bf16
    w2 = w2_ref[0]                                    # (FFN, HP) bf16
    vec = vec_ref[0]                                  # (NVEC, HP) f32
    scale = 1.0 / math.sqrt(HD)

    # ---- attention: one fused QKV matmul (bf16 operands, f32 accumulate) ----
    qkv = jnp.dot(x.astype(bf16), wqkv, preferred_element_type=f32) + vec[0:1]

    ctx_heads = []
    for h in range(NH):                               # NH is small & static
        q = qkv[:, h * HD:(h + 1) * HD]               # (S, HD)
        k = qkv[:, H + h * HD:H + (h + 1) * HD]
        v = qkv[:, 2 * H + h * HD:2 * H + (h + 1) * HD]
        s = jax.lax.dot_general(q, k, (((1,), (1,)), ((), ())),
                                preferred_element_type=f32) * scale + bias
        s = s - jnp.max(s, axis=-1, keepdims=True)
        p = jnp.exp(s)
        p = p * pl.reciprocal(jnp.sum(p, axis=-1, keepdims=True), approx=True)
        ctx_heads.append(jnp.dot(p, v, preferred_element_type=f32))

    # fused output projection: one (S, H) @ (H, HP) matmul for all heads
    ctx = jnp.concatenate(ctx_heads, axis=-1)         # (S, H)
    attn = jnp.dot(ctx.astype(bf16), wo, preferred_element_type=f32) + vec[1:2]

    # residual + LayerNorm 1
    h1 = layer_norm(x + attn, vec[2:3], vec[3:4])

    # feed-forward (tanh GELU)
    f = jnp.dot(h1.astype(bf16), w1, preferred_element_type=f32) + vec[4:5, :FFN]
    f = jax.nn.gelu(f, approximate=True)
    f = jnp.dot(f.astype(bf16), w2, preferred_element_type=f32) + vec[5:6]

    # residual + LayerNorm 2
    xnew = layer_norm(h1 + f, vec[6:7], vec[7:8])
    xs_ref[...] = xnew

    # ---- last layer: masked mean pooling for this sentence -----------------
    @pl.when(l == pl.num_programs(1) - 1)
    def _():
        cnt = jnp.maximum(jnp.sum(m, axis=-1, keepdims=True), 1e-9)  # (1, 1)
        pool = m * (1.0 / cnt)                                       # (1, S)
        out_ref[0] = jnp.dot(pool, xnew, preferred_element_type=f32)


# ------------------------------ wrapper ---------------------------------------
def fused_forward(mask, x_emb, padded):
    ins = [mask, x_emb, padded["emb_ln"],
           padded["wqkv"], padded["wo"], padded["w1"], padded["w2"],
           padded["vecs"]]
    in_specs = [
        pl.BlockSpec((1, 1, S), lambda b, l: (b, 0, 0)),        # mask
        pl.BlockSpec((1, S, HP), lambda b, l: (b, 0, 0)),       # embeddings
        pl.BlockSpec((2, HP), lambda b, l: (0, 0)),             # emb LN params
        pl.BlockSpec((1, HP, QKVP), lambda b, l: (l, 0, 0)),    # streamed weights
        pl.BlockSpec((1, H, HP), lambda b, l: (l, 0, 0)),
        pl.BlockSpec((1, HP, FFN), lambda b, l: (l, 0, 0)),
        pl.BlockSpec((1, FFN, HP), lambda b, l: (l, 0, 0)),
        pl.BlockSpec((1, NVEC, HP), lambda b, l: (l, 0, 0)),    # packed vectors
    ]
    return pl.pallas_call(
        fused_encoder_kernel,
        out_shape=jax.ShapeDtypeStruct((B, 1, HP), jnp.float32),
        grid_spec=pltpu.PrefetchScalarGridSpec(
            num_scalar_prefetch=0, grid=(B, LAYERS),
            in_specs=in_specs,
            out_specs=pl.BlockSpec((1, 1, HP), lambda b, l: (b, 0, 0)),
            scratch_shapes=[pltpu.VMEM((S, HP), jnp.float32)]),
        compiler_params=pltpu.CompilerParams(
            dimension_semantics=("parallel", "arbitrary")),
    )(*ins)


# ----------------------------- parameters -------------------------------------
def init_params(key):
    keys = jax.random.split(key, 64)
    ki = iter(range(64))

    def nrm(shape, scale=0.02):
        return (scale * jax.random.normal(keys[next(ki)], shape)).astype(jnp.float32)

    params = {
        "tok_emb": nrm((VOCAB, H)),
        "pos_emb": nrm((MAX_POS, H)),
        "type_emb": nrm((2, H)),
        "emb_ln_g": 1.0 + nrm((1, H), 0.05),
        "emb_ln_b": nrm((1, H), 0.05),
        "layers": [],
    }
    for _ in range(LAYERS):
        params["layers"].append({
            "wq": nrm((H, H)), "bq": nrm((1, H)),
            "wk": nrm((H, H)), "bk": nrm((1, H)),
            "wv": nrm((H, H)), "bv": nrm((1, H)),
            "wo": nrm((H, H)), "bo": nrm((1, H)),
            "ln1_g": 1.0 + nrm((1, H), 0.05), "ln1_b": nrm((1, H), 0.05),
            "w1": nrm((H, FFN)), "b1": nrm((1, FFN)),
            "w2": nrm((FFN, H)), "b2": nrm((1, H)),
            "ln2_g": 1.0 + nrm((1, H), 0.05), "ln2_b": nrm((1, H), 0.05),
        })
    return params


def pad_and_stack(params):
    """Zero-pad weights to lane-friendly (but tight) shapes and stack per layer.

    Per-layer resident bytes drop from ~654 KiB (previous HDP=128 layout, f32)
    to ~76 KiB (this layout, bf16 matrices + f32 vectors)."""
    def pad2(w, r, c):
        return jnp.zeros((r, c), jnp.float32).at[:w.shape[0], :w.shape[1]].set(w)

    emb_ln = jnp.concatenate([pad2(params["emb_ln_g"], 1, HP),
                              pad2(params["emb_ln_b"], 1, HP)], axis=0)  # (2, HP)

    wqkv_l, wo_l, w1_l, w2_l, vec_l = [], [], [], [], []
    for lp in params["layers"]:
        wqkv = jnp.zeros((HP, QKVP), jnp.float32)
        wqkv = wqkv.at[:H, 0:H].set(lp["wq"])
        wqkv = wqkv.at[:H, H:2 * H].set(lp["wk"])
        wqkv = wqkv.at[:H, 2 * H:3 * H].set(lp["wv"])
        bqkv = jnp.zeros((1, QKVP), jnp.float32)
        bqkv = (bqkv.at[:, 0:H].set(lp["bq"])
                     .at[:, H:2 * H].set(lp["bk"])
                     .at[:, 2 * H:3 * H].set(lp["bv"]))
        wo = pad2(lp["wo"], H, HP)          # (H, HP)   — no head-dim padding
        w1 = pad2(lp["w1"], HP, FFN)        # (HP, FFN) — real 64-wide FFN
        w2 = pad2(lp["w2"], FFN, HP)        # (FFN, HP)
        vec = jnp.concatenate([
            bqkv,                           # 0: qkv bias
            pad2(lp["bo"], 1, HP),          # 1: output-proj bias
            pad2(lp["ln1_g"], 1, HP),       # 2
            pad2(lp["ln1_b"], 1, HP),       # 3
            pad2(lp["b1"], 1, HP),          # 4 (real lanes [:FFN])
            pad2(lp["b2"], 1, HP),          # 5
            pad2(lp["ln2_g"], 1, HP),       # 6
            pad2(lp["ln2_b"], 1, HP),       # 7
        ], axis=0)                          # (NVEC, HP)
        wqkv_l.append(wqkv); wo_l.append(wo)
        w1_l.append(w1); w2_l.append(w2); vec_l.append(vec)

    return {
        "emb_ln": emb_ln,
        # matrices stored bf16 (MXU operands); vectors / LN params stay f32
        "wqkv": jnp.stack(wqkv_l).astype(jnp.bfloat16),
        "wo": jnp.stack(wo_l).astype(jnp.bfloat16),
        "w1": jnp.stack(w1_l).astype(jnp.bfloat16),
        "w2": jnp.stack(w2_l).astype(jnp.bfloat16),
        "vecs": jnp.stack(vec_l),
    }


# ------------------------------ forward ---------------------------------------
def sent_encoder_forward(params, padded, token_ids, attention_mask):
    """token_ids: (B, S) int32; attention_mask: (B, S) (1=token, 0=pad).
    Returns sentence embeddings (B, H) — SBERT mean-pooled 'sentence_embedding'."""
    mask = attention_mask.astype(jnp.float32).reshape(B, 1, S)

    # embedding lookup (gather stays in plain JAX)
    emb = (jnp.take(params["tok_emb"], token_ids, axis=0)
           + params["pos_emb"][:S][None, :, :]
           + params["type_emb"][0][None, None, :]).astype(jnp.float32)
    x_emb = jnp.zeros((B, S, HP), jnp.float32).at[:, :, :H].set(emb)

    pooled = fused_forward(mask, x_emb, padded)       # (B, 1, HP)
    return pooled[:, 0, :H]


# --------------------- pure-JAX reference (for checking) ----------------------
def reference_forward(params, token_ids, attention_mask):
    mask = attention_mask.astype(jnp.float32)

    def ln(x, g, b):
        mu = jnp.mean(x, axis=-1, keepdims=True)
        var = jnp.mean((x - mu) ** 2, axis=-1, keepdims=True)
        return (x - mu) * jax.lax.rsqrt(var + LN_EPS) * g + b

    emb = (jnp.take(params["tok_emb"], token_ids, axis=0)
           + params["pos_emb"][:S][None, :, :]
           + params["type_emb"][0][None, None, :]).astype(jnp.float32)
    x = ln(emb, params["emb_ln_g"], params["emb_ln_b"])
    neg = ((1.0 - mask) * -1e9)[:, None, None, :]                    # (B,1,1,S)

    for lp in params["layers"]:
        q = x @ lp["wq"] + lp["bq"]
        k = x @ lp["wk"] + lp["bk"]
        v = x @ lp["wv"] + lp["bv"]
        qh = q.reshape(B, S, NH, HD).transpose(0, 2, 1, 3)
        kh = k.reshape(B, S, NH, HD).transpose(0, 2, 1, 3)
        vh = v.reshape(B, S, NH, HD).transpose(0, 2, 1, 3)
        s = jnp.einsum("bhqd,bhkd->bhqk", qh, kh) / math.sqrt(HD) + neg
        p = jax.nn.softmax(s, axis=-1)
        ctx = jnp.einsum("bhqk,bhkd->bhqd", p, vh)
        ctx = ctx.transpose(0, 2, 1, 3).reshape(B, S, H)
        attn = ctx @ lp["wo"] + lp["bo"]
        h1 = ln(x + attn, lp["ln1_g"], lp["ln1_b"])
        f = jax.nn.gelu(h1 @ lp["w1"] + lp["b1"], approximate=True)
        f = f @ lp["w2"] + lp["b2"]
        x = ln(h1 + f, lp["ln2_g"], lp["ln2_b"])

    m3 = mask[:, :, None]
    return jnp.sum(x * m3, axis=1) / jnp.maximum(jnp.sum(m3, axis=1), 1e-9)


# -------------------------------- main -----------------------------------------
if __name__ == "__main__":
    root = jax.random.PRNGKey(0)
    k_params, k_tok = jax.random.split(root)

    params = init_params(k_params)
    padded = pad_and_stack(params)

    token_ids = jax.random.randint(k_tok, (B, S), 0, VOCAB, dtype=jnp.int32)
    attention_mask = jnp.array([[1, 1, 1, 1, 1, 1, 1, 1],
                                [1, 1, 1, 1, 1, 0, 0, 0]], dtype=jnp.float32)

    embeddings = sent_encoder_forward(params, padded, token_ids, attention_mask)
    embeddings = jax.block_until_ready(embeddings)

    ref = reference_forward(params, token_ids, attention_mask)

    assert embeddings.shape == (B, H)
    assert bool(jnp.all(jnp.isfinite(embeddings)))
    max_err = float(jnp.max(jnp.abs(embeddings - ref)))
    assert max_err < 2e-2, f"mismatch vs pure-JAX reference: {max_err}"
    print("KERNEL_OK")
</pallas_src>

<mosaic_0001>
module attributes {stable_mosaic.version = 11 : i64} {
  func.func @fused_encoder_kernel(%arg0: i32, %arg1: i32, %arg2: memref<1x1x8xf32, #tpu.memory_space<vmem>>, %arg3: memref<1x8x128xf32, #tpu.memory_space<vmem>>, %arg4: memref<2x128xf32, #tpu.memory_space<vmem>>, %arg5: memref<1x128x128xbf16, #tpu.memory_space<vmem>>, %arg6: memref<1x32x128xbf16, #tpu.memory_space<vmem>>, %arg7: memref<1x128x64xbf16, #tpu.memory_space<vmem>>, %arg8: memref<1x64x128xbf16, #tpu.memory_space<vmem>>, %arg9: memref<1x8x128xf32, #tpu.memory_space<vmem>>, %arg10: memref<1x1x128xf32, #tpu.memory_space<vmem>>, %arg11: memref<8x128xf32, #tpu.memory_space<vmem>>) attributes {dimension_semantics = [#tpu.dimension_semantics<parallel>, #tpu.dimension_semantics<arbitrary>], iteration_bounds = array<i64: 2, 2>, scalar_prefetch = 0 : i64, scratch_operands = 1 : i64, tpu.core_type = #tpu.core_type<tc>, window_params = [{transform_indices = @transform_0, window_bounds = array<i64: 1, 1, 8>}, {transform_indices = @transform_1, window_bounds = array<i64: 1, 8, 128>}, {pipeline_mode = #tpu.pipeline_mode<synchronous>, transform_indices = @transform_2, window_bounds = array<i64: 2, 128>}, {transform_indices = @transform_3, window_bounds = array<i64: 1, 128, 128>}, {transform_indices = @transform_4, window_bounds = array<i64: 1, 32, 128>}, {transform_indices = @transform_5, window_bounds = array<i64: 1, 128, 64>}, {transform_indices = @transform_6, window_bounds = array<i64: 1, 64, 128>}, {transform_indices = @transform_7, window_bounds = array<i64: 1, 8, 128>}, {transform_indices = @transform_8, window_bounds = array<i64: 1, 1, 128>}]} {
    %0 = tpu.iota {dimensions = array<i32: 1>} : vector<1x128xi32>
    %c32_i32 = arith.constant 32 : i32
    %1 = vector.broadcast %c32_i32 : i32 to vector<1x128xi32>
    %2 = arith.cmpi slt, %0, %1 : vector<1x128xi32>
    %3 = arith.extui %2 : vector<1x128xi1> to vector<1x128xi32>
    %4 = arith.sitofp %3 : vector<1x128xi32> to vector<1x128xf32>
    %c0_i32 = arith.constant 0 : i32
    %5 = arith.cmpi eq, %arg1, %c0_i32 : i32
    %6 = arith.extui %5 : i1 to i32
    %c0_i32_0 = arith.constant 0 : i32
    %7 = arith.cmpi ne, %6, %c0_i32_0 : i32
    scf.if %7 {
      %c0_53 = arith.constant 0 : index
      %c0_54 = arith.constant 0 : index
      %152 = vector.load %arg4[%c0_53, %c0_54] : memref<2x128xf32, #tpu.memory_space<vmem>>, vector<2x128xf32>
      %c0_55 = arith.constant 0 : index
      %c0_56 = arith.constant 0 : index
      %c0_57 = arith.constant 0 : index
      %153 = vector.load %arg3[%c0_55, %c0_56, %c0_57] : memref<1x8x128xf32, #tpu.memory_space<vmem>>, vector<1x8x128xf32>
      %154 = vector.shape_cast %153 : vector<1x8x128xf32> to vector<8x128xf32>
      %155 = vector.extract_strided_slice %152 {offsets = [0, 0], sizes = [1, 128], strides = [1, 1]} : vector<2x128xf32> to vector<1x128xf32>
      %156 = vector.extract_strided_slice %152 {offsets = [1, 0], sizes = [1, 128], strides = [1, 1]} : vector<2x128xf32> to vector<1x128xf32>
      %cst_58 = arith.constant dense<0.000000e+00> : vector<8xf32>
      %157 = vector.multi_reduction <add>, %154, %cst_58 [1] : vector<8x128xf32> to vector<8xf32>
      %158 = vector.shape_cast %157 : vector<8xf32> to vector<8x1xf32>
      %cst_59 = arith.constant 3.125000e-02 : f32
      %159 = vector.broadcast %cst_59 : f32 to vector<8x1xf32>
      %160 = arith.mulf %158, %159 : vector<8x1xf32>
      %161 = vector.broadcast %160 : vector<8x1xf32> to vector<8x128xf32>
      %162 = arith.subf %154, %161 : vector<8x128xf32>
      %163 = vector.broadcast %4 : vector<1x128xf32> to vector<8x128xf32>
      %164 = arith.mulf %162, %163 : vector<8x128xf32>
      %165 = arith.mulf %164, %164 : vector<8x128xf32>
      %cst_60 = arith.constant dense<0.000000e+00> : vector<8xf32>
      %166 = vector.multi_reduction <add>, %165, %cst_60 [1] : vector<8x128xf32> to vector<8xf32>
      %167 = vector.shape_cast %166 : vector<8xf32> to vector<8x1xf32>
      %cst_61 = arith.constant 3.125000e-02 : f32
      %168 = vector.broadcast %cst_61 : f32 to vector<8x1xf32>
      %169 = arith.mulf %167, %168 : vector<8x1xf32>
      %cst_62 = arith.constant 9.99999996E-13 : f32
      %170 = vector.broadcast %cst_62 : f32 to vector<8x1xf32>
      %171 = arith.addf %169, %170 : vector<8x1xf32>
      %172 = math.rsqrt %171 : vector<8x1xf32>
      %173 = vector.broadcast %172 : vector<8x1xf32> to vector<8x128xf32>
      %174 = arith.mulf %164, %173 : vector<8x128xf32>
      %175 = vector.broadcast %155 : vector<1x128xf32> to vector<8x128xf32>
      %176 = arith.mulf %174, %175 : vector<8x128xf32>
      %177 = vector.broadcast %156 : vector<1x128xf32> to vector<8x128xf32>
      %178 = arith.addf %176, %177 : vector<8x128xf32>
      %c0_63 = arith.constant 0 : index
      %c0_64 = arith.constant 0 : index
      %179 = vector.load %arg11[%c0_63, %c0_64] : memref<8x128xf32, #tpu.memory_space<vmem>>, vector<8x128xf32>
      tpu.vector_store %arg11[%c0_63, %c0_64], %178 {strides = array<i32>} : memref<8x128xf32, #tpu.memory_space<vmem>>, vector<8x128xf32>,
    } else {
    }
    %c0 = arith.constant 0 : index
    %c0_1 = arith.constant 0 : index
    %8 = vector.load %arg11[%c0, %c0_1] : memref<8x128xf32, #tpu.memory_space<vmem>>, vector<8x128xf32>
    %c0_2 = arith.constant 0 : index
    %c0_3 = arith.constant 0 : index
    %c0_4 = arith.constant 0 : index
    %9 = vector.load %arg2[%c0_2, %c0_3, %c0_4] : memref<1x1x8xf32, #tpu.memory_space<vmem>>, vector<1x1x8xf32>
    %10 = vector.shape_cast %9 : vector<1x1x8xf32> to vector<1x8xf32>
    %11 = vector.shape_cast %10 : vector<1x8xf32> to vector<1x8xf32>
    %12 = vector.broadcast %11 : vector<1x8xf32> to vector<8x8xf32>
    %cst = arith.constant 5.000000e-01 : f32
    %13 = vector.broadcast %cst : f32 to vector<8x8xf32>
    %14 = arith.cmpf ogt, %12, %13 : vector<8x8xf32>
    %cst_5 = arith.constant 0.000000e+00 : f32
    %cst_6 = arith.constant -1.000000e+09 : f32
    %15 = vector.broadcast %cst_5 : f32 to vector<8x8xf32>
    %16 = vector.broadcast %cst_6 : f32 to vector<8x8xf32>
    %17 = arith.select %14, %15, %16 : vector<8x8xi1>, vector<8x8xf32>
    %c0_7 = arith.constant 0 : index
    %c0_8 = arith.constant 0 : index
    %c0_9 = arith.constant 0 : index
    %18 = vector.load %arg5[%c0_7, %c0_8, %c0_9] : memref<1x128x128xbf16, #tpu.memory_space<vmem>>, vector<1x128x128xbf16>
    %19 = vector.shape_cast %18 : vector<1x128x128xbf16> to vector<128x128xbf16>
    %c0_10 = arith.constant 0 : index
    %c0_11 = arith.constant 0 : index
    %c0_12 = arith.constant 0 : index
    %20 = vector.load %arg6[%c0_10, %c0_11, %c0_12] : memref<1x32x128xbf16, #tpu.memory_space<vmem>>, vector<1x32x128xbf16>
    %21 = vector.shape_cast %20 : vector<1x32x128xbf16> to vector<32x128xbf16>
    %c0_13 = arith.constant 0 : index
    %c0_14 = arith.constant 0 : index
    %c0_15 = arith.constant 0 : index
    %22 = vector.load %arg7[%c0_13, %c0_14, %c0_15] : memref<1x128x64xbf16, #tpu.memory_space<vmem>>, vector<1x128x64xbf16>
    %23 = vector.shape_cast %22 : vector<1x128x64xbf16> to vector<128x64xbf16>
    %c0_16 = arith.constant 0 : index
    %c0_17 = arith.constant 0 : index
    %c0_18 = arith.constant 0 : index
    %24 = vector.load %arg8[%c0_16, %c0_17, %c0_18] : memref<1x64x128xbf16, #tpu.memory_space<vmem>>, vector<1x64x128xbf16>
    %25 = vector.shape_cast %24 : vector<1x64x128xbf16> to vector<64x128xbf16>
    %c0_19 = arith.constant 0 : index
    %c0_20 = arith.constant 0 : index
    %c0_21 = arith.constant 0 : index
    %26 = vector.load %arg9[%c0_19, %c0_20, %c0_21] : memref<1x8x128xf32, #tpu.memory_space<vmem>>, vector<1x8x128xf32>
    %27 = vector.shape_cast %26 : vector<1x8x128xf32> to vector<8x128xf32>
    %28 = arith.truncf %8 : vector<8x128xf32> to vector<8x128xbf16>
    %cst_22 = arith.constant dense<0.000000e+00> : vector<8x128xf32>
    %29 = tpu.matmul %28, %19, %cst_22 {dimension_numbers = #tpu.dot_dimension_numbers<[1], [0], [0], [1], [0, 0, 1, 1], [], []>} : vector<8x128xbf16>, vector<128x128xbf16>, vector<8x128xf32> -> vector<8x128xf32>
    %30 = vector.extract_strided_slice %27 {offsets = [0, 0], sizes = [1, 128], strides = [1, 1]} : vector<8x128xf32> to vector<1x128xf32>
    %31 = vector.broadcast %30 : vector<1x128xf32> to vector<8x128xf32>
    %32 = arith.addf %29, %31 : vector<8x128xf32>
    %33 = vector.extract_strided_slice %32 {offsets = [0, 0], sizes = [8, 16], strides = [1, 1]} : vector<8x128xf32> to vector<8x16xf32>
    %34 = vector.extract_strided_slice %32 {offsets = [0, 32], sizes = [8, 16], strides = [1, 1]} : vector<8x128xf32> to vector<8x16xf32>
    %35 = vector.extract_strided_slice %32 {offsets = [0, 64], sizes = [8, 16], strides = [1, 1]} : vector<8x128xf32> to vector<8x16xf32>
    %cst_23 = arith.constant dense<0.000000e+00> : vector<8x8xf32>
    %36 = tpu.matmul %33, %34, %cst_23 {dimension_numbers = #tpu.dot_dimension_numbers<[1], [1], [0], [0], [0, 0, 1, 0], [], []>} : vector<8x16xf32>, vector<8x16xf32>, vector<8x8xf32> -> vector<8x8xf32>
    %cst_24 = arith.constant 2.500000e-01 : f32
    %37 = vector.broadcast %cst_24 : f32 to vector<8x8xf32>
    %38 = arith.mulf %36, %37 : vector<8x8xf32>
    %39 = arith.addf %38, %17 : vector<8x8xf32>
    %cst_25 = arith.constant dense<0xFF800000> : vector<8xf32>
    %40 = vector.multi_reduction <maximumf>, %39, %cst_25 [1] : vector<8x8xf32> to vector<8xf32>
    %41 = vector.shape_cast %40 : vector<8xf32> to vector<8x1xf32>
    %42 = vector.broadcast %41 : vector<8x1xf32> to vector<8x8xf32>
    %43 = arith.subf %39, %42 : vector<8x8xf32>
    %44 = math.exp %43 : vector<8x8xf32>
    %cst_26 = arith.constant dense<0.000000e+00> : vector<8xf32>
    %45 = vector.multi_reduction <add>, %44, %cst_26 [1] : vector<8x8xf32> to vector<8xf32>
    %46 = vector.shape_cast %45 : vector<8xf32> to vector<8x1xf32>
    %47 = tpu.reciprocal %46 {approx = true} : vector<8x1xf32> -> vector<8x1xf32>
    %48 = vector.broadcast %47 : vector<8x1xf32> to vector<8x8xf32>
    %49 = arith.mulf %44, %48 : vector<8x8xf32>
    %cst_27 = arith.constant dense<0.000000e+00> : vector<8x16xf32>
    %50 = tpu.matmul %49, %35, %cst_27 {dimension_numbers = #tpu.dot_dimension_numbers<[1], [0], [0], [1], [0, 0, 1, 1], [], []>} : vector<8x8xf32>, vector<8x16xf32>, vector<8x16xf32> -> vector<8x16xf32>
    %51 = vector.extract_strided_slice %32 {offsets = [0, 16], sizes = [8, 16], strides = [1, 1]} : vector<8x128xf32> to vector<8x16xf32>
    %52 = vector.extract_strided_slice %32 {offsets = [0, 48], sizes = [8, 16], strides = [1, 1]} : vector<8x128xf32> to vector<8x16xf32>
    %53 = vector.extract_strided_slice %32 {offsets = [0, 80], sizes = [8, 16], strides = [1, 1]} : vector<8x128xf32> to vector<8x16xf32>
    %cst_28 = arith.constant dense<0.000000e+00> : vector<8x8xf32>
    %54 = tpu.matmul %51, %52, %cst_28 {dimension_numbers = #tpu.dot_dimension_numbers<[1], [1], [0], [0], [0, 0, 1, 0], [], []>} : vector<8x16xf32>, vector<8x16xf32>, vector<8x8xf32> -> vector<8x8xf32>
    %cst_29 = arith.constant 2.500000e-01 : f32
    %55 = vector.broadcast %cst_29 : f32 to vector<8x8xf32>
    %56 = arith.mulf %54, %55 : vector<8x8xf32>
    %57 = arith.addf %56, %17 : vector<8x8xf32>
    %cst_30 = arith.constant dense<0xFF800000> : vector<8xf32>
    %58 = vector.multi_reduction <maximumf>, %57, %cst_30 [1] : vector<8x8xf32> to vector<8xf32>
    %59 = vector.shape_cast %58 : vector<8xf32> to vector<8x1xf32>
    %60 = vector.broadcast %59 : vector<8x1xf32> to vector<8x8xf32>
    %61 = arith.subf %57, %60 : vector<8x8xf32>
    %62 = math.exp %61 : vector<8x8xf32>
    %cst_31 = arith.constant dense<0.000000e+00> : vector<8xf32>
    %63 = vector.multi_reduction <add>, %62, %cst_31 [1] : vector<8x8xf32> to vector<8xf32>
    %64 = vector.shape_cast %63 : vector<8xf32> to vector<8x1xf32>
    %65 = tpu.reciprocal %64 {approx = true} : vector<8x1xf32> -> vector<8x1xf32>
    %66 = vector.broadcast %65 : vector<8x1xf32> to vector<8x8xf32>
    %67 = arith.mulf %62, %66 : vector<8x8xf32>
    %cst_32 = arith.constant dense<0.000000e+00> : vector<8x16xf32>
    %68 = tpu.matmul %67, %53, %cst_32 {dimension_numbers = #tpu.dot_dimension_numbers<[1], [0], [0], [1], [0, 0, 1, 1], [], []>} : vector<8x8xf32>, vector<8x16xf32>, vector<8x16xf32> -> vector<8x16xf32>
    %69 = tpu.concatenate %50, %68 in 1 : vector<8x16xf32>, vector<8x16xf32> -> vector<8x32xf32>
    %70 = arith.truncf %69 : vector<8x32xf32> to vector<8x32xbf16>
    %cst_33 = arith.constant dense<0.000000e+00> : vector<8x128xf32>
    %71 = tpu.matmul %70, %21, %cst_33 {dimension_numbers = #tpu.dot_dimension_numbers<[1], [0], [0], [1], [0, 0, 1, 1], [], []>} : vector<8x32xbf16>, vector<32x128xbf16>, vector<8x128xf32> -> vector<8x128xf32>
    %72 = vector.extract_strided_slice %27 {offsets = [1, 0], sizes = [1, 128], strides = [1, 1]} : vector<8x128xf32> to vector<1x128xf32>
    %73 = vector.broadcast %72 : vector<1x128xf32> to vector<8x128xf32>
    %74 = arith.addf %71, %73 : vector<8x128xf32>
    %75 = arith.addf %8, %74 : vector<8x128xf32>
    %76 = vector.extract_strided_slice %27 {offsets = [2, 0], sizes = [1, 128], strides = [1, 1]} : vector<8x128xf32> to vector<1x128xf32>
    %77 = vector.extract_strided_slice %27 {offsets = [3, 0], sizes = [1, 128], strides = [1, 1]} : vector<8x128xf32> to vector<1x128xf32>
    %cst_34 = arith.constant dense<0.000000e+00> : vector<8xf32>
    %78 = vector.multi_reduction <add>, %75, %cst_34 [1] : vector<8x128xf32> to vector<8xf32>
    %79 = vector.shape_cast %78 : vector<8xf32> to vector<8x1xf32>
    %cst_35 = arith.constant 3.125000e-02 : f32
    %80 = vector.broadcast %cst_35 : f32 to vector<8x1xf32>
    %81 = arith.mulf %79, %80 : vector<8x1xf32>
    %82 = vector.broadcast %81 : vector<8x1xf32> to vector<8x128xf32>
    %83 = arith.subf %75, %82 : vector<8x128xf32>
    %84 = vector.broadcast %4 : vector<1x128xf32> to vector<8x128xf32>
    %85 = arith.mulf %83, %84 : vector<8x128xf32>
    %86 = arith.mulf %85, %85 : vector<8x128xf32>
    %cst_36 = arith.constant dense<0.000000e+00> : vector<8xf32>
    %87 = vector.multi_reduction <add>, %86, %cst_36 [1] : vector<8x128xf32> to vector<8xf32>
    %88 = vector.shape_cast %87 : vector<8xf32> to vector<8x1xf32>
    %cst_37 = arith.constant 3.125000e-02 : f32
    %89 = vector.broadcast %cst_37 : f32 to vector<8x1xf32>
    %90 = arith.mulf %88, %89 : vector<8x1xf32>
    %cst_38 = arith.constant 9.99999996E-13 : f32
    %91 = vector.broadcast %cst_38 : f32 to vector<8x1xf32>
    %92 = arith.addf %90, %91 : vector<8x1xf32>
    %93 = math.rsqrt %92 : vector<8x1xf32>
    %94 = vector.broadcast %93 : vector<8x1xf32> to vector<8x128xf32>
    %95 = arith.mulf %85, %94 : vector<8x128xf32>
    %96 = vector.broadcast %76 : vector<1x128xf32> to vector<8x128xf32>
    %97 = arith.mulf %95, %96 : vector<8x128xf32>
    %98 = vector.broadcast %77 : vector<1x128xf32> to vector<8x128xf32>
    %99 = arith.addf %97, %98 : vector<8x128xf32>
    %100 = arith.truncf %99 : vector<8x128xf32> to vector<8x128xbf16>
    %cst_39 = arith.constant dense<0.000000e+00> : vector<8x64xf32>
    %101 = tpu.matmul %100, %23, %cst_39 {dimension_numbers = #tpu.dot_dimension_numbers<[1], [0], [0], [1], [0, 0, 1, 1], [], []>} : vector<8x128xbf16>, vector<128x64xbf16>, vector<8x64xf32> -> vector<8x64xf32>
    %102 = vector.extract_strided_slice %27 {offsets = [4, 0], sizes = [1, 64], strides = [1, 1]} : vector<8x128xf32> to vector<1x64xf32>
    %103 = vector.broadcast %102 : vector<1x64xf32> to vector<8x64xf32>
    %104 = arith.addf %101, %103 : vector<8x64xf32>
    %105 = arith.mulf %104, %104 : vector<8x64xf32>
    %106 = arith.mulf %104, %105 : vector<8x64xf32>
    %cst_40 = arith.constant 4.471500e-02 : f32
    %107 = vector.broadcast %cst_40 : f32 to vector<8x64xf32>
    %108 = arith.mulf %107, %106 : vector<8x64xf32>
    %109 = arith.addf %104, %108 : vector<8x64xf32>
    %cst_41 = arith.constant 0.797884583 : f32
    %110 = vector.broadcast %cst_41 : f32 to vector<8x64xf32>
    %111 = arith.mulf %110, %109 : vector<8x64xf32>
    %112 = math.tanh %111 : vector<8x64xf32>
    %cst_42 = arith.constant 1.000000e+00 : f32
    %113 = vector.broadcast %cst_42 : f32 to vector<8x64xf32>
    %114 = arith.addf %113, %112 : vector<8x64xf32>
    %cst_43 = arith.constant 5.000000e-01 : f32
    %115 = vector.broadcast %cst_43 : f32 to vector<8x64xf32>
    %116 = arith.mulf %115, %114 : vector<8x64xf32>
    %117 = arith.mulf %104, %116 : vector<8x64xf32>
    %118 = arith.truncf %117 : vector<8x64xf32> to vector<8x64xbf16>
    %cst_44 = arith.constant dense<0.000000e+00> : vector<8x128xf32>
    %119 = tpu.matmul %118, %25, %cst_44 {dimension_numbers = #tpu.dot_dimension_numbers<[1], [0], [0], [1], [0, 0, 1, 1], [], []>} : vector<8x64xbf16>, vector<64x128xbf16>, vector<8x128xf32> -> vector<8x128xf32>
    %120 = vector.extract_strided_slice %27 {offsets = [5, 0], sizes = [1, 128], strides = [1, 1]} : vector<8x128xf32> to vector<1x128xf32>
    %121 = vector.broadcast %120 : vector<1x128xf32> to vector<8x128xf32>
    %122 = arith.addf %119, %121 : vector<8x128xf32>
    %123 = arith.addf %99, %122 : vector<8x128xf32>
    %124 = vector.extract_strided_slice %27 {offsets = [6, 0], sizes = [1, 128], strides = [1, 1]} : vector<8x128xf32> to vector<1x128xf32>
    %125 = vector.extract_strided_slice %27 {offsets = [7, 0], sizes = [1, 128], strides = [1, 1]} : vector<8x128xf32> to vector<1x128xf32>
    %cst_45 = arith.constant dense<0.000000e+00> : vector<8xf32>
    %126 = vector.multi_reduction <add>, %123, %cst_45 [1] : vector<8x128xf32> to vector<8xf32>
    %127 = vector.shape_cast %126 : vector<8xf32> to vector<8x1xf32>
    %cst_46 = arith.constant 3.125000e-02 : f32
    %128 = vector.broadcast %cst_46 : f32 to vector<8x1xf32>
    %129 = arith.mulf %127, %128 : vector<8x1xf32>
    %130 = vector.broadcast %129 : vector<8x1xf32> to vector<8x128xf32>
    %131 = arith.subf %123, %130 : vector<8x128xf32>
    %132 = vector.broadcast %4 : vector<1x128xf32> to vector<8x128xf32>
    %133 = arith.mulf %131, %132 : vector<8x128xf32>
    %134 = arith.mulf %133, %133 : vector<8x128xf32>
    %cst_47 = arith.constant dense<0.000000e+00> : vector<8xf32>
    %135 = vector.multi_reduction <add>, %134, %cst_47 [1] : vector<8x128xf32> to vector<8xf32>
    %136 = vector.shape_cast %135 : vector<8xf32> to vector<8x1xf32>
    %cst_48 = arith.constant 3.125000e-02 : f32
    %137 = vector.broadcast %cst_48 : f32 to vector<8x1xf32>
    %138 = arith.mulf %136, %137 : vector<8x1xf32>
    %cst_49 = arith.constant 9.99999996E-13 : f32
    %139 = vector.broadcast %cst_49 : f32 to vector<8x1xf32>
    %140 = arith.addf %138, %139 : vector<8x1xf32>
    %141 = math.rsqrt %140 : vector<8x1xf32>
    %142 = vector.broadcast %141 : vector<8x1xf32> to vector<8x128xf32>
    %143 = arith.mulf %133, %142 : vector<8x128xf32>
    %144 = vector.broadcast %124 : vector<1x128xf32> to vector<8x128xf32>
    %145 = arith.mulf %143, %144 : vector<8x128xf32>
    %146 = vector.broadcast %125 : vector<1x128xf32> to vector<8x128xf32>
    %147 = arith.addf %145, %146 : vector<8x128xf32>
    %c0_50 = arith.constant 0 : index
    %c0_51 = arith.constant 0 : index
    %148 = vector.load %arg11[%c0_50, %c0_51] : memref<8x128xf32, #tpu.memory_space<vmem>>, vector<8x128xf32>
    tpu.vector_store %arg11[%c0_50, %c0_51], %147 {strides = array<i32>} : memref<8x128xf32, #tpu.memory_space<vmem>>, vector<8x128xf32>,
    %c1_i32 = arith.constant 1 : i32
    %149 = arith.cmpi eq, %arg1, %c1_i32 : i32
    %150 = arith.extui %149 : i1 to i32
    %c0_i32_52 = arith.constant 0 : i32
    %151 = arith.cmpi ne, %150, %c0_i32_52 : i32
    scf.if %151 {
      %cst_53 = arith.constant dense<0.000000e+00> : vector<1xf32>
      %152 = vector.multi_reduction <add>, %10, %cst_53 [1] : vector<1x8xf32> to vector<1xf32>
      %153 = vector.shape_cast %152 : vector<1xf32> to vector<1x1xf32>
      %cst_54 = arith.constant 9.99999971E-10 : f32
      %154 = vector.broadcast %cst_54 : f32 to vector<1x1xf32>
      %155 = arith.maximumf %153, %154 : vector<1x1xf32>
      %cst_55 = arith.constant 1.000000e+00 : f32
      %156 = vector.broadcast %cst_55 : f32 to vector<1x1xf32>
      %157 = arith.divf %156, %155 : vector<1x1xf32>
      %158 = vector.broadcast %157 : vector<1x1xf32> to vector<1x8xf32>
      %159 = arith.mulf %10, %158 : vector<1x8xf32>
      %cst_56 = arith.constant dense<0.000000e+00> : vector<1x128xf32>
      %160 = tpu.matmul %159, %147, %cst_56 {dimension_numbers = #tpu.dot_dimension_numbers<[1], [0], [0], [1], [0, 0, 1, 1], [], []>} : vector<1x8xf32>, vector<8x128xf32>, vector<1x128xf32> -> vector<1x128xf32>
      %c0_57 = arith.constant 0 : index
      %c0_58 = arith.constant 0 : index
      %c0_59 = arith.constant 0 : index
      %161 = vector.load %arg10[%c0_57, %c0_58, %c0_59] : memref<1x1x128xf32, #tpu.memory_space<vmem>>, vector<1x1x128xf32>
      %162 = vector.shape_cast %161 : vector<1x1x128xf32> to vector<1x128xf32>
      %163 = vector.shape_cast %160 : vector<1x128xf32> to vector<1x1x128xf32>
      tpu.vector_store %arg10[%c0_57, %c0_58, %c0_59], %163 {strides = array<i32>} : memref<1x1x128xf32, #tpu.memory_space<vmem>>, vector<1x1x128xf32>,
    } else {
    }
    return
  }
  func.func @transform_0(%arg0: i32, %arg1: i32) -> (i32, i32, i32) {
    %c0_i32 = arith.constant 0 : i32
    %c0_i32_0 = arith.constant 0 : i32
    %c0_i32_1 = arith.constant 0 : i32
    return %arg0, %c0_i32, %c0_i32_0 : i32, i32, i32
  }
  func.func @transform_1(%arg0: i32, %arg1: i32) -> (i32, i32, i32) {
    %c0_i32 = arith.constant 0 : i32
    %c0_i32_0 = arith.constant 0 : i32
    %c0_i32_1 = arith.constant 0 : i32
    return %arg0, %c0_i32, %c0_i32_0 : i32, i32, i32
  }
  func.func @transform_2(%arg0: i32, %arg1: i32) -> (i32, i32) {
    %c0_i32 = arith.constant 0 : i32
    %c0_i32_0 = arith.constant 0 : i32
    %c0_i32_1 = arith.constant 0 : i32
    return %c0_i32, %c0_i32_0 : i32, i32
  }
  func.func @transform_3(%arg0: i32, %arg1: i32) -> (i32, i32, i32) {
    %c0_i32 = arith.constant 0 : i32
    %c0_i32_0 = arith.constant 0 : i32
    %c0_i32_1 = arith.constant 0 : i32
    return %arg1, %c0_i32, %c0_i32_0 : i32, i32, i32
  }
  func.func @transform_4(%arg0: i32, %arg1: i32) -> (i32, i32, i32) {
    %c0_i32 = arith.constant 0 : i32
    %c0_i32_0 = arith.constant 0 : i32
    %c0_i32_1 = arith.constant 0 : i32
    return %arg1, %c0_i32, %c0_i32_0 : i32, i32, i32
  }
  func.func @transform_5(%arg0: i32, %arg1: i32) -> (i32, i32, i32) {
    %c0_i32 = arith.constant 0 : i32
    %c0_i32_0 = arith.constant 0 : i32
    %c0_i32_1 = arith.constant 0 : i32
    return %arg1, %c0_i32, %c0_i32_0 : i32, i32, i32
  }
  func.func @transform_6(%arg0: i32, %arg1: i32) -> (i32, i32, i32) {
    %c0_i32 = arith.constant 0 : i32
    %c0_i32_0 = arith.constant 0 : i32
    %c0_i32_1 = arith.constant 0 : i32
    return %arg1, %c0_i32, %c0_i32_0 : i32, i32, i32
  }
  func.func @transform_7(%arg0: i32, %arg1: i32) -> (i32, i32, i32) {
    %c0_i32 = arith.constant 0 : i32
    %c0_i32_0 = arith.constant 0 : i32
    %c0_i32_1 = arith.constant 0 : i32
    return %arg1, %c0_i32, %c0_i32_0 : i32, i32, i32
  }
  func.func @transform_8(%arg0: i32, %arg1: i32) -> (i32, i32, i32) {
    %c0_i32 = arith.constant 0 : i32
    %c0_i32_0 = arith.constant 0 : i32
    %c0_i32_1 = arith.constant 0 : i32
    return %arg0, %c0_i32, %c0_i32_0 : i32, i32, i32
  }
}

</mosaic_0001>

<llo_original>
// kernel: tpu_custom_call.1
$region0: #{tpu_custom_call.1}
  #allocation0 [shape = 'u32[]', space=smem, size = 0x4, offset = 0x4, fixed_abs, tag = 'smem constant byte address 0x4 - core index']
  #allocation1 [shape = 'u32[144,128]{1,0:T(1,128)}', space=vmem, size = 0x12000, scoped, tag = 'internal scratch']
  #allocation2 [shape = 'f32[8,128]{1,0:T(8,128)}', space=vmem, size = 0x1000, scoped, tag = 'scratch operand']
  %s0 = inlined_call_operand.vmem [shape: f32[2,1,8], index: 0, kind: input, shape index: {}]
  %s1 = inlined_call_operand.hbm [shape: f32[2,8,128], index: 1, kind: input, shape index: {}]
  %s2 = inlined_call_operand.hbm [shape: f32[2,128], index: 2, kind: input, shape index: {}]
  %s3 = inlined_call_operand.vmem [shape: bf16[2,128,128], index: 3, kind: input, shape index: {}]
  %s4 = inlined_call_operand.hbm [shape: bf16[2,32,128], index: 4, kind: input, shape index: {}]
  %s5 = inlined_call_operand.vmem [shape: bf16[2,128,64], index: 5, kind: input, shape index: {}]
  %s6 = inlined_call_operand.vmem [shape: bf16[2,64,128], index: 6, kind: input, shape index: {}]
  %s7 = inlined_call_operand.vmem [shape: f32[2,8,128], index: 7, kind: input, shape index: {}]
  %s8 = inlined_call_operand.hbm [shape: f32[2,1,128], index: 8, kind: output, shape index: {}]
  %s9 = sld [smem:[#allocation0]]
  $region85: #{tpu_custom_call.1} parent=0
    _
  %s11 = ssub.s32 1, %s9
  %s12 = scalar_select 0, %s11, %s9
  $region1: #{tpu_custom_call.1} parent=0
    #allocation3 [shape = 'u8[8192]{0}', space=vmem, size = 0x2000, scoped, tag = 'input window, operand 1']
    #allocation4 [shape = 's32[2]{0}', space=sflag, size = 0x8, scoped, tag = 'scoped memory for tpu_custom_call.1']
    #allocation5 [shape = 's32[2]{0}', space=sflag, size = 0x8, scoped, tag = 'scoped memory for tpu_custom_call.1']
    #allocation6 [shape = 'u8[1024]{0}', space=vmem, size = 0x400, scoped, tag = 'input window, operand 2, single buffered']
    #allocation7 [shape = 's32[1]{0}', space=sflag, size = 0x4, scoped, tag = 'scoped memory for tpu_custom_call.1']
    #allocation8 [shape = 'u8[16384]{0}', space=vmem, size = 0x4000, scoped, tag = 'input window, operand 4']
    #allocation9 [shape = 'u8[1024]{0}', space=vmem, size = 0x400, scoped, tag = 'output window, operand 0']
    %13 = vsyncpa [#allocation4], 0
    %s14 = scalar_lea.sflag [#allocation4], 1
    %15 = vsyncpa %s14, 0
    %16 = vsyncpa [#allocation7], 0
    %17 = vsyncpa [#allocation5], 0
    %s18 = scalar_lea.sflag [#allocation5], 1
    %19 = vsyncpa %s18, 0
    loop: start=0, step=1, limit=6
    $region2: #{tpu_custom_call.1} parent=1 // loop_pre_header
      _
    $region3: #{tpu_custom_call.1} parent=1 // loop_header
      %s21 = sphi 0, %s25
      %p22 = scmp.ge.s32.totalorder %s21, 6
      %s28 = sphi 0, %s40
      %s29 = sphi 0, %s36
      %s30 = sphi 0, %s28
      %s31 = sphi 0, %s29
      %s32 = sphi 0, %s30
      %s33 = sphi 0, %s31
      %s43 = sphi 0, %s45
      %s46 = sphi 0, %s43
      %s47 = sphi 0, %s46
      %s63 = sphi 0, %s47
      %s69 = sphi 0, %s71
      %s72 = sphi 0, %s69
      %s73 = sphi 0, %s72
      %s89 = sphi 0, %s73
      %s93 = sphi 0, %s93
      %s95 = sphi 0, %s93
      %s96 = sphi 0, %s95
      %s110 = sphi 0, %s96
      %s116 = sphi 0, %s118
      %s119 = sphi 0, %s116
      %s120 = sphi 0, %s119
      %s136 = sphi 0, %s120
      %s142 = sphi 0, %s144
      %s145 = sphi 0, %s142
      %s146 = sphi 0, %s145
      %s162 = sphi 0, %s146
      %s168 = sphi 0, %s170
      %s171 = sphi 0, %s168
      %s172 = sphi 0, %s171
      %s188 = sphi 0, %s172
      %s194 = sphi 0, %s196
      %s197 = sphi 0, %s194
      %s198 = sphi 0, %s197
      %s214 = sphi 0, %s198
      %s220 = sphi 0, %s222
      %s223 = sphi 0, %s220
      %s224 = sphi 0, %s223
      %s240 = sphi 0, %s224
      %s246 = sphi 0, %s248
      %s249 = sphi 0, %s246
      %s250 = sphi 0, %s249
      %s266 = sphi 0, %s250
    $region4: #{tpu_custom_call.1} parent=1 // loop_header_branch
      %24 = sbr.rel (%p22) target = $region8
    $region5: #{tpu_custom_call.1} parent=1 // loop_body
      %s26 = ssub.s32 %s21, 1
      %s27 = ssub.s32 %s21, 2
      %s34 = sadd.s32 1, %s29
      %p35 = scmp.ge.s32.totalorder %s34, 2
      %s36 = scalar_select %p35, 0, %s34
      %s37 = sadd.s32 1, %s28
      %s38 = scalar_select %p35, %s37, %s28
      %p39 = scmp.ge.s32.totalorder %s38, 2
      %s40 = scalar_select %p39, 0, %s38
      %s41 = ssub.s32 %s28, %s40
      %p42 = scmp.eq.s32.totalorder %s41, 0
      %s44 = sadd.s32 %s43, 1
      %s45 = scalar_select %p42, %s43, %s44
      %p48 = pneg %p42
      %p49 = scmp.eq.s32.totalorder %s21, 3
      %p50 = por %p48, %p49
      %p51 = scmp.ne.s32.totalorder %s43, %s46
      %p52 = scmp.eq.s32.totalorder %s21, 0
      %p53 = por %p51, %p52
      %p54 = scmp.ne.s32.totalorder %s43, %s46
      %p55 = scmp.eq.s32.totalorder %s26, 3
      %p56 = por %p54, %p55
      %p57 = scmp.ne.s32.totalorder %s46, %s47
      %p58 = scmp.eq.s32.totalorder %s26, 0
      %p59 = por %p57, %p58
      %p60 = scmp.ne.s32.totalorder %s46, %s47
      %p61 = scmp.eq.s32.totalorder %s27, 3
      %p62 = por %p60, %p61
      %p64 = scmp.ne.s32.totalorder %s47, %s63
      %p65 = scmp.eq.s32.totalorder %s27, 0
      %p66 = por %p64, %p65
      %s67 = ssub.s32 %s28, %s40
      %p68 = scmp.eq.s32.totalorder %s67, 0
      %s70 = sadd.s32 %s69, 1
      %s71 = scalar_select %p68, %s69, %s70
      %p74 = pneg %p68
      %p75 = scmp.eq.s32.totalorder %s21, 3
      %p76 = por %p74, %p75
      %p77 = scmp.ne.s32.totalorder %s69, %s72
      %p78 = scmp.eq.s32.totalorder %s21, 0
      %p79 = por %p77, %p78
      %p80 = scmp.ne.s32.totalorder %s69, %s72
      %p81 = scmp.eq.s32.totalorder %s26, 3
      %p82 = por %p80, %p81
      %p83 = scmp.ne.s32.totalorder %s72, %s73
      %p84 = scmp.eq.s32.totalorder %s26, 0
      %p85 = por %p83, %p84
      %p86 = scmp.ne.s32.totalorder %s72, %s73
      %p87 = scmp.eq.s32.totalorder %s27, 3
      %p88 = por %p86, %p87
      %p90 = scmp.ne.s32.totalorder %s73, %s89
      %p91 = scmp.eq.s32.totalorder %s27, 0
      %p92 = por %p90, %p91
      %s94 = sadd.s32 %s93, 1
      %p97 = scmp.eq.s32.totalorder %s21, 3
      %p98 = scmp.ne.s32.totalorder %s93, %s95
      %p99 = scmp.eq.s32.totalorder %s21, 0
      %p100 = por %p98, %p99
      %p101 = scmp.ne.s32.totalorder %s93, %s95
      %p102 = scmp.eq.s32.totalorder %s26, 3
      %p103 = por %p101, %p102
      %p104 = scmp.ne.s32.totalorder %s95, %s96
      %p105 = scmp.eq.s32.totalorder %s26, 0
      %p106 = por %p104, %p105
      %p107 = scmp.ne.s32.totalorder %s95, %s96
      %p108 = scmp.eq.s32.totalorder %s27, 3
      %p109 = por %p107, %p108
      %p111 = scmp.ne.s32.totalorder %s96, %s110
      %p112 = scmp.eq.s32.totalorder %s27, 0
      %p113 = por %p111, %p112
      %s114 = ssub.s32 %s29, %s36
      %p115 = scmp.eq.s32.totalorder %s114, 0
      %s117 = sadd.s32 %s116, 1
      %s118 = scalar_select %p115, %s116, %s117
      %p121 = pneg %p115
      %p122 = scmp.eq.s32.totalorder %s21, 3
      %p123 = por %p121, %p122
      %p124 = scmp.ne.s32.totalorder %s116, %s119
      %p125 = scmp.eq.s32.totalorder %s21, 0
      %p126 = por %p124, %p125
      %p127 = scmp.ne.s32.totalorder %s116, %s119
      %p128 = scmp.eq.s32.totalorder %s26, 3
      %p129 = por %p127, %p128
      %p130 = scmp.ne.s32.totalorder %s119, %s120
      %p131 = scmp.eq.s32.totalorder %s26, 0
      %p132 = por %p130, %p131
      %p133 = scmp.ne.s32.totalorder %s119, %s120
      %p134 = scmp.eq.s32.totalorder %s27, 3
      %p135 = por %p133, %p134
      %p137 = scmp.ne.s32.totalorder %s120, %s136
      %p138 = scmp.eq.s32.totalorder %s27, 0
      %p139 = por %p137, %p138
      %s140 = ssub.s32 %s29, %s36
      %p141 = scmp.eq.s32.totalorder %s140, 0
      %s143 = sadd.s32 %s142, 1
      %s144 = scalar_select %p141, %s142, %s143
      %p147 = pneg %p141
      %p148 = scmp.eq.s32.totalorder %s21, 3
      %p149 = por %p147, %p148
      %p150 = scmp.ne.s32.totalorder %s142, %s145
      %p151 = scmp.eq.s32.totalorder %s21, 0
      %p152 = por %p150, %p151
      %p153 = scmp.ne.s32.totalorder %s142, %s145
      %p154 = scmp.eq.s32.totalorder %s26, 3
      %p155 = por %p153, %p154
      %p156 = scmp.ne.s32.totalorder %s145, %s146
      %p157 = scmp.eq.s32.totalorder %s26, 0
      %p158 = por %p156, %p157
      %p159 = scmp.ne.s32.totalorder %s145, %s146
      %p160 = scmp.eq.s32.totalorder %s27, 3
      %p161 = por %p159, %p160
      %p163 = scmp.ne.s32.totalorder %s146, %s162
      %p164 = scmp.eq.s32.totalorder %s27, 0
      %p165 = por %p163, %p164
      %s166 = ssub.s32 %s29, %s36
      %p167 = scmp.eq.s32.totalorder %s166, 0
      %s169 = sadd.s32 %s168, 1
      %s170 = scalar_select %p167, %s168, %s169
      %p173 = pneg %p167
      %p174 = scmp.eq.s32.totalorder %s21, 3
      %p175 = por %p173, %p174
      %p176 = scmp.ne.s32.totalorder %s168, %s171
      %p177 = scmp.eq.s32.totalorder %s21, 0
      %p178 = por %p176, %p177
      %p179 = scmp.ne.s32.totalorder %s168, %s171
      %p180 = scmp.eq.s32.totalorder %s26, 3
      %p181 = por %p179, %p180
      %p182 = scmp.ne.s32.totalorder %s171, %s172
      %p183 = scmp.eq.s32.totalorder %s26, 0
      %p184 = por %p182, %p183
      %p185 = scmp.ne.s32.totalorder %s171, %s172
      %p186 = scmp.eq.s32.totalorder %s27, 3
      %p187 = por %p185, %p186
      %p189 = scmp.ne.s32.totalorder %s172, %s188
      %p190 = scmp.eq.s32.totalorder %s27, 0
      %p191 = por %p189, %p190
      %s192 = ssub.s32 %s29, %s36
      %p193 = scmp.eq.s32.totalorder %s192, 0
      %s195 = sadd.s32 %s194, 1
      %s196 = scalar_select %p193, %s194, %s195
      %p199 = pneg %p193
      %p200 = scmp.eq.s32.totalorder %s21, 3
      %p201 = por %p199, %p200
      %p202 = scmp.ne.s32.totalorder %s194, %s197
      %p203 = scmp.eq.s32.totalorder %s21, 0
      %p204 = por %p202, %p203
      %p205 = scmp.ne.s32.totalorder %s194, %s197
      %p206 = scmp.eq.s32.totalorder %s26, 3
      %p207 = por %p205, %p206
      %p208 = scmp.ne.s32.totalorder %s197, %s198
      %p209 = scmp.eq.s32.totalorder %s26, 0
      %p210 = por %p208, %p209
      %p211 = scmp.ne.s32.totalorder %s197, %s198
      %p212 = scmp.eq.s32.totalorder %s27, 3
      %p213 = por %p211, %p212
      %p215 = scmp.ne.s32.totalorder %s198, %s214
      %p216 = scmp.eq.s32.totalorder %s27, 0
      %p217 = por %p215, %p216
      %s218 = ssub.s32 %s29, %s36
      %p219 = scmp.eq.s32.totalorder %s218, 0
      %s221 = sadd.s32 %s220, 1
      %s222 = scalar_select %p219, %s220, %s221
      %p225 = pneg %p219
      %p226 = scmp.eq.s32.totalorder %s21, 3
      %p227 = por %p225, %p226
      %p228 = scmp.ne.s32.totalorder %s220, %s223
      %p229 = scmp.eq.s32.totalorder %s21, 0
      %p230 = por %p228, %p229
      %p231 = scmp.ne.s32.totalorder %s220, %s223
      %p232 = scmp.eq.s32.totalorder %s26, 3
      %p233 = por %p231, %p232
      %p234 = scmp.ne.s32.totalorder %s223, %s224
      %p235 = scmp.eq.s32.totalorder %s26, 0
      %p236 = por %p234, %p235
      %p237 = scmp.ne.s32.totalorder %s223, %s224
      %p238 = scmp.eq.s32.totalorder %s27, 3
      %p239 = por %p237, %p238
      %p241 = scmp.ne.s32.totalorder %s224, %s240
      %p242 = scmp.eq.s32.totalorder %s27, 0
      %p243 = por %p241, %p242
      %s244 = ssub.s32 %s28, %s40
      %p245 = scmp.eq.s32.totalorder %s244, 0
      %s247 = sadd.s32 %s246, 1
      %s248 = scalar_select %p245, %s246, %s247
      %p251 = pneg %p245
      %p252 = scmp.eq.s32.totalorder %s21, 3
      %p253 = por %p251, %p252
      %p254 = scmp.ne.s32.totalorder %s246, %s249
      %p255 = scmp.eq.s32.totalorder %s21, 0
      %p256 = por %p254, %p255
      %p257 = scmp.ne.s32.totalorder %s246, %s249
      %p258 = scmp.eq.s32.totalorder %s26, 3
      %p259 = por %p257, %p258
      %p260 = scmp.ne.s32.totalorder %s249, %s250
      %p261 = scmp.eq.s32.totalorder %s26, 0
      %p262 = por %p260, %p261
      %p263 = scmp.ne.s32.totalorder %s249, %s250
      %p264 = scmp.eq.s32.totalorder %s27, 3
      %p265 = por %p263, %p264
      %p267 = scmp.ne.s32.totalorder %s250, %s266
      %p268 = scmp.eq.s32.totalorder %s27, 0
      %p269 = por %p267, %p268
      %p270 = scmp.le.s32.totalorder 1, %s21
      %p271 = scmp.lt.s32.totalorder %s21, 5
      %p272 = pnand %p270, %p271
      %p273 = pneg %p272
      // Predicated region
      $region9: #{tpu_custom_call.1} parent=5 // pred_check
        _
      $region10: #{tpu_custom_call.1} parent=5 // pred_check_branch
        %275 = sbr.rel (%p272) target = $region12
      $region11: #{tpu_custom_call.1} parent=5 // pred_region
        %s276 = ssub.s32 %s21, 1
        // Predicated region
        $region13: #{tpu_custom_call.1} parent=11 // pred_check
          %p277 = pneg %p106
        $region14: #{tpu_custom_call.1} parent=11 // pred_check_branch
          %279 = sbr.rel (%p277) target = $region16
        $region15: #{tpu_custom_call.1} parent=11 // pred_region
          %s281 = ssub.s32 32, 32
          %282 = vsyncadd [#allocation7], %s281
          %s284 = sshll.u32 [#allocation6], 4
          %s285 = int_to_ptr.vmem [resolvable:$true] %s284
          %287 = dma.hbm_to_vmem [thread:$0]  %s2, 32, %s285, [#allocation7]
        $region16: #{tpu_custom_call.1} parent=11 // pred_fallthru
          _
      $region12: #{tpu_custom_call.1} parent=5 // pred_fallthru
        _
      %p288 = scmp.lt.s32.totalorder %s21, 4
      // Predicated region
      $region17: #{tpu_custom_call.1} parent=5 // pred_check
        %p289 = pneg %p288
      $region18: #{tpu_custom_call.1} parent=5 // pred_check_branch
        %291 = sbr.rel (%p289) target = $region20
      $region19: #{tpu_custom_call.1} parent=5 // pred_region
        // Predicated region
        $region21: #{tpu_custom_call.1} parent=19 // pred_check
          %p292 = pneg %p53
        $region22: #{tpu_custom_call.1} parent=19 // pred_check_branch
          %294 = sbr.rel (%p292) target = $region24
        $region23: #{tpu_custom_call.1} parent=19 // pred_region
          %p295 = scmp.lt.s32.totalorder %s28, 1
          %s296 = scalar_select %p295, %s28, 1
          %s297 = scalar_lea.vmem %s0, %s296
        $region24: #{tpu_custom_call.1} parent=19 // pred_fallthru
          _
        // Predicated region
        $region25: #{tpu_custom_call.1} parent=19 // pred_check
          %p298 = pneg %p79
        $region26: #{tpu_custom_call.1} parent=19 // pred_check_branch
          %300 = sbr.rel (%p298) target = $region28
        $region27: #{tpu_custom_call.1} parent=19 // pred_region
          %s301 = sand.u32 %s21, 1
          %s302 = scalar_lea.sflag [#allocation4], %s301
          %s303 = sand.u32 %s69, 1
          %s304 = smul.addr %s303, 8
          %s305 = scalar_lea.vmem [#allocation3], %s304
          %s307 = ssub.s32 128, 128
          %308 = vsyncadd %s302, %s307
          %s309 = smul.addr %s28, 128
          %s310 = scalar_lea.hbm %s1, %s309
          %s312 = sshll.u32 %s305, 4
          %s313 = int_to_ptr.vmem [resolvable:$true] %s312
          %315 = dma.hbm_to_vmem [thread:$0]  %s310, 128, %s313, %s302
        $region28: #{tpu_custom_call.1} parent=19 // pred_fallthru
          _
        // Predicated region
        $region29: #{tpu_custom_call.1} parent=19 // pred_check
          %p316 = pneg %p126
        $region30: #{tpu_custom_call.1} parent=19 // pred_check_branch
          %318 = sbr.rel (%p316) target = $region32
        $region31: #{tpu_custom_call.1} parent=19 // pred_region
          %p319 = scmp.lt.s32.totalorder %s29, 1
          %s320 = scalar_select %p319, %s29, 1
          %s321 = smul.addr %s320, 16
          %s322 = smul.addr %s321, 4
          %s323 = scalar_lea.vmem %s3, %s322
        $region32: #{tpu_custom_call.1} parent=19 // pred_fallthru
          _
        // Predicated region
        $region33: #{tpu_custom_call.1} parent=19 // pred_check
          %p324 = pneg %p152
        $region34: #{tpu_custom_call.1} parent=19 // pred_check_branch
          %326 = sbr.rel (%p324) target = $region36
        $region35: #{tpu_custom_call.1} parent=19 // pred_region
          %s327 = sand.u32 %s21, 1
          %s328 = scalar_lea.sflag [#allocation4], %s327
          %s329 = sand.u32 %s142, 1
          %s330 = smul.addr %s329, 16
          %s331 = scalar_lea.vmem [#allocation8], %s330
          %s333 = ssub.s32 256, 256
          %334 = vsyncadd %s328, %s333
          %s335 = smul.addr %s29, 4
          %s336 = smul.addr %s335, 64
          %s337 = scalar_lea.hbm %s4, %s336
          %s338 = sshll.u32 %s331, 4
          %s339 = int_to_ptr.vmem [resolvable:$true] %s338
          %344 = dma.hbm_to_vmem [thread:$0]  %s337, 256, %s339, %s328, 64, 64, 4
        $region36: #{tpu_custom_call.1} parent=19 // pred_fallthru
          _
        // Predicated region
        $region37: #{tpu_custom_call.1} parent=19 // pred_check
          %p345 = pneg %p178
        $region38: #{tpu_custom_call.1} parent=19 // pred_check_branch
          %347 = sbr.rel (%p345) target = $region40
        $region39: #{tpu_custom_call.1} parent=19 // pred_region
          %p348 = scmp.lt.s32.totalorder %s29, 1
          %s349 = scalar_select %p348, %s29, 1
          %s350 = smul.addr %s349, 16
          %s351 = smul.addr %s350, 4
          %s352 = scalar_lea.vmem %s5, %s351
        $region40: #{tpu_custom_call.1} parent=19 // pred_fallthru
          _
        // Predicated region
        $region41: #{tpu_custom_call.1} parent=19 // pred_check
          %p353 = pneg %p204
        $region42: #{tpu_custom_call.1} parent=19 // pred_check_branch
          %355 = sbr.rel (%p353) target = $region44
        $region43: #{tpu_custom_call.1} parent=19 // pred_region
          %p356 = scmp.lt.s32.totalorder %s29, 1
          %s357 = scalar_select %p356, %s29, 1
          %s358 = smul.addr %s357, 8
          %s359 = smul.addr %s358, 4
          %s360 = scalar_lea.vmem %s6, %s359
        $region44: #{tpu_custom_call.1} parent=19 // pred_fallthru
          _
        // Predicated region
        $region45: #{tpu_custom_call.1} parent=19 // pred_check
          %p361 = pneg %p230
        $region46: #{tpu_custom_call.1} parent=19 // pred_check_branch
          %363 = sbr.rel (%p361) target = $region48
        $region47: #{tpu_custom_call.1} parent=19 // pred_region
          %p364 = scmp.lt.s32.totalorder %s29, 1
          %s365 = scalar_select %p364, %s29, 1
          %s366 = smul.addr %s365, 8
          %s367 = scalar_lea.vmem %s7, %s366
        $region48: #{tpu_custom_call.1} parent=19 // pred_fallthru
          _
      $region20: #{tpu_custom_call.1} parent=5 // pred_fallthru
        _
      %p368 = scmp.le.s32.totalorder 1, %s21
      %p369 = scmp.lt.s32.totalorder %s21, 5
      %p370 = pnand %p368, %p369
      %p371 = pneg %p370
      // Predicated region
      $region49: #{tpu_custom_call.1} parent=5 // pred_check
        _
      $region50: #{tpu_custom_call.1} parent=5 // pred_check_branch
        %373 = sbr.rel (%p370) target = $region52
      $region51: #{tpu_custom_call.1} parent=5 // pred_region
        %s374 = ssub.s32 %s21, 1
        %s375 = sand.u32 %s26, 1
        %s376 = scalar_lea.sflag [#allocation4], %s375
        %s377 = sand.u32 %s72, 1
        %s378 = smul.addr %s377, 8
        %s379 = scalar_lea.vmem [#allocation3], %s378
        // Predicated region
        $region53: #{tpu_custom_call.1} parent=51 // pred_check
          %p380 = pneg %p85
        $region54: #{tpu_custom_call.1} parent=51 // pred_check_branch
          %382 = sbr.rel (%p380) target = $region56
        $region55: #{tpu_custom_call.1} parent=51 // pred_region
          %383 = dma.done %s376, 128
        $region56: #{tpu_custom_call.1} parent=51 // pred_fallthru
          _
        // Predicated region
        $region57: #{tpu_custom_call.1} parent=51 // pred_check
          %p384 = pneg %p106
        $region58: #{tpu_custom_call.1} parent=51 // pred_check_branch
          %386 = sbr.rel (%p384) target = $region60
        $region59: #{tpu_custom_call.1} parent=51 // pred_region
          %387 = dma.done [#allocation7], 32
        $region60: #{tpu_custom_call.1} parent=51 // pred_fallthru
          _
        %s388 = sand.u32 %s26, 1
        %s389 = scalar_lea.sflag [#allocation4], %s388
        %s390 = sand.u32 %s145, 1
        %s391 = smul.addr %s390, 16
        %s392 = scalar_lea.vmem [#allocation8], %s391
        // Predicated region
        $region61: #{tpu_custom_call.1} parent=51 // pred_check
          %p393 = pneg %p158
        $region62: #{tpu_custom_call.1} parent=51 // pred_check_branch
          %395 = sbr.rel (%p393) target = $region64
        $region63: #{tpu_custom_call.1} parent=51 // pred_region
          %396 = dma.done %s389, 256
        $region64: #{tpu_custom_call.1} parent=51 // pred_fallthru
          _
        %p397 = scmp.lt.s32.totalorder %s30, 1
        %s398 = scalar_select %p397, %s30, 1
        %s399 = scalar_lea.vmem %s0, %s398
        %p400 = pneg %p59
        %p401 = pneg %p56
        %s402 = sand.u32 %s26, 1
        %s403 = scalar_lea.sflag [#allocation4], %s402
        %s404 = sand.u32 %s72, 1
        %s405 = smul.addr %s404, 8
        %s406 = scalar_lea.vmem [#allocation3], %s405
        %p407 = pneg %p85
        %p408 = pneg %p82
        %p409 = pneg %p106
        %p410 = pneg %p103
        %p411 = scmp.lt.s32.totalorder %s31, 1
        %s412 = scalar_select %p411, %s31, 1
        %s413 = smul.addr %s412, 16
        %s414 = smul.addr %s413, 4
        %s415 = scalar_lea.vmem %s3, %s414
        %p416 = pneg %p132
        %p417 = pneg %p129
        %s418 = sand.u32 %s26, 1
        %s419 = scalar_lea.sflag [#allocation4], %s418
        %s420 = sand.u32 %s145, 1
        %s421 = smul.addr %s420, 16
        %s422 = scalar_lea.vmem [#allocation8], %s421
        %p423 = pneg %p158
        %p424 = pneg %p155
        %p425 = scmp.lt.s32.totalorder %s31, 1
        %s426 = scalar_select %p425, %s31, 1
        %s427 = smul.addr %s426, 16
        %s428 = smul.addr %s427, 4
        %s429 = scalar_lea.vmem %s5, %s428
        %p430 = pneg %p184
        %p431 = pneg %p181
        %p432 = scmp.lt.s32.totalorder %s31, 1
        %s433 = scalar_select %p432, %s31, 1
        %s434 = smul.addr %s433, 8
        %s435 = smul.addr %s434, 4
        %s436 = scalar_lea.vmem %s6, %s435
        %p437 = pneg %p210
        %p438 = pneg %p207
        %p439 = scmp.lt.s32.totalorder %s31, 1
        %s440 = scalar_select %p439, %s31, 1
        %s441 = smul.addr %s440, 8
        %s442 = scalar_lea.vmem %s7, %s441
        %p443 = pneg %p236
        %p444 = pneg %p233
        %p445 = pneg %p262
        %p446 = pneg %p259
        %s447 = sand.u32 %s249, 1
        %s448 = scalar_lea.sflag [#allocation5], %s447
        %s449 = sand.u32 %s249, 1
        %s450 = scalar_lea.vmem [#allocation9], %s449
        %p451 = scmp.lt.s32.totalorder %s30, 1
        %s452 = scalar_select %p451, %s30, 1
        %s453 = scalar_lea.vmem %s0, %s452
        %p454 = scmp.lt.s32.totalorder %s31, 1
        %s455 = scalar_select %p454, %s31, 1
        %s456 = smul.addr %s455, 16
        %s457 = smul.addr %s456, 4
        %s458 = scalar_lea.vmem %s3, %s457
        %p459 = scmp.lt.s32.totalorder %s31, 1
        %s460 = scalar_select %p459, %s31, 1
        %s461 = smul.addr %s460, 16
        %s462 = smul.addr %s461, 4
        %s463 = scalar_lea.vmem %s5, %s462
        %p464 = scmp.lt.s32.totalorder %s31, 1
        %s465 = scalar_select %p464, %s31, 1
        %s466 = smul.addr %s465, 8
        %s467 = smul.addr %s466, 4
        %s468 = scalar_lea.vmem %s6, %s467
        %p469 = scmp.lt.s32.totalorder %s31, 1
        %s470 = scalar_select %p469, %s31, 1
        %s471 = smul.addr %s470, 8
        %s472 = scalar_lea.vmem %s7, %s471
        %v474 = vlaneseq
        %v475 = vand.u32 %v474, 127
        %vm476 = vcmp.lt.s32.totalorder %v475, 32
        %v477 = vsel %vm476, 1, 0
        %v478 = vcvt.s32.f32 %v477
        %p479 = scmp.eq.s32.totalorder %s31, 0
        // Predicated region
        $region65: #{tpu_custom_call.1} parent=51 // pred_check
          %p480 = pneg %p479
        $region66: #{tpu_custom_call.1} parent=51 // pred_check_branch
          %482 = sbr.rel (%p480) target = $region68
        $region67: #{tpu_custom_call.1} parent=51 // pred_region
          %v483 = vld [vmem:[#allocation6] sm:$0x3]
          %v484 = vld [vmem:[%s379] sm:$0xff]
          %485 = vadd.xlane.f32.xlu0 %v484
          %v486 = vpop.xlane.xlu0 %485
          %v487 = vmul.f32 %v486, 0.03125
          %v488 = vsub.f32 %v484, %v487
          %v489 = vmul.f32 %v488, %v478
          %v490 = vmul.f32 %v489, %v489
          %491 = vadd.xlane.f32.xlu0 %v490
          %v492 = vpop.xlane.xlu0 %491
          %v493 = vmul.f32 %v492, 0.03125
          %v494 = vadd.f32 %v493, 1e-12
          %v495 = vrsqrt.pop %v494
          %v496 = vmul.f32 %v489, %v495
          %v497 = vlaneseq
          %v498 = vshrl.u32 %v497, 7
          %v499 = vsub.s32 0, %v498
          %v500 = vrot.slane %v483, %v499
          %v501 = vmul.f32 %v496, %v500
          %v502 = vlaneseq
          %v503 = vshrl.u32 %v502, 7
          %v504 = vsub.s32 1, %v503
          %v505 = vrot.slane %v483, %v504
          %v506 = vadd.f32 %v501, %v505
          %507 = vst [vmem:[#allocation2] sm:$0xff] %v506
        $region68: #{tpu_custom_call.1} parent=51 // pred_fallthru
          _
        %v508 = vld [vmem:[#allocation2] sm:$0xff]
        %v509 = vld [vmem:[%s453] sm:$0x1]
        %v511 = vlaneseq
        %v512 = vshrl.u32 %v511, 7
        %v513 = vsub.s32 0, %v512
        %v514 = vrot.slane %v509, %v513
        %vm516 = vcmp.gt.f32.partialorder %v514, 0.5
        %v517 = vsel %vm516, 0.0, -1e+09
        %v518 = vld [vmem:[%s458] sm:$0xf]
        %v519 = vld [vmem:[%s458 + $0x4] sm:$0xf]
        %v520 = vld [vmem:[%s458 + $0x8] sm:$0xf]
        %v521 = vld [vmem:[%s458 + $0xc] sm:$0xf]
        %v522 = vld [vmem:[%s458 + $0x10] sm:$0xf]
        %v523 = vld [vmem:[%s458 + $0x14] sm:$0xf]
        %v524 = vld [vmem:[%s458 + $0x18] sm:$0xf]
        %v525 = vld [vmem:[%s458 + $0x1c] sm:$0xf]
        %v526 = vld [vmem:[%s458 + $0x20] sm:$0xf]
        %v527 = vld [vmem:[%s458 + $0x24] sm:$0xf]
        %v528 = vld [vmem:[%s458 + $0x28] sm:$0xf]
        %v529 = vld [vmem:[%s458 + $0x2c] sm:$0xf]
        %v530 = vld [vmem:[%s458 + $0x30] sm:$0xf]
        %v531 = vld [vmem:[%s458 + $0x34] sm:$0xf]
        %v532 = vld [vmem:[%s458 + $0x38] sm:$0xf]
        %v533 = vld [vmem:[%s458 + $0x3c] sm:$0xf]
        %v534 = vld [vmem:[%s392] sm:$0xf]
        %v535 = vld [vmem:[%s392 + $0x4] sm:$0xf]
        %v536 = vld [vmem:[%s392 + $0x8] sm:$0xf]
        %v537 = vld [vmem:[%s392 + $0xc] sm:$0xf]
        %v538 = vld [vmem:[%s463] sm:$0xf]
        %v539 = vld [vmem:[%s463 + $0x4] sm:$0xf]
        %v540 = vld [vmem:[%s463 + $0x8] sm:$0xf]
        %v541 = vld [vmem:[%s463 + $0xc] sm:$0xf]
        %v542 = vld [vmem:[%s463 + $0x10] sm:$0xf]
        %v543 = vld [vmem:[%s463 + $0x14] sm:$0xf]
        %v544 = vld [vmem:[%s463 + $0x18] sm:$0xf]
        %v545 = vld [vmem:[%s463 + $0x1c] sm:$0xf]
        %v546 = vld [vmem:[%s463 + $0x20] sm:$0xf]
        %v547 = vld [vmem:[%s463 + $0x24] sm:$0xf]
        %v548 = vld [vmem:[%s463 + $0x28] sm:$0xf]
        %v549 = vld [vmem:[%s463 + $0x2c] sm:$0xf]
        %v550 = vld [vmem:[%s463 + $0x30] sm:$0xf]
        %v551 = vld [vmem:[%s463 + $0x34] sm:$0xf]
        %v552 = vld [vmem:[%s463 + $0x38] sm:$0xf]
        %v553 = vld [vmem:[%s463 + $0x3c] sm:$0xf]
        %v554 = vld [vmem:[%s468] sm:$0xf]
        %v555 = vld [vmem:[%s468 + $0x4] sm:$0xf]
        %v556 = vld [vmem:[%s468 + $0x8] sm:$0xf]
        %v557 = vld [vmem:[%s468 + $0xc] sm:$0xf]
        %v558 = vld [vmem:[%s468 + $0x10] sm:$0xf]
        %v559 = vld [vmem:[%s468 + $0x14] sm:$0xf]
        %v560 = vld [vmem:[%s468 + $0x18] sm:$0xf]
        %v561 = vld [vmem:[%s468 + $0x1c] sm:$0xf]
        %v562 = vld [vmem:[%s472] sm:$0xff]
        %v563 = vpack.c.bf16 %v508, %v508
        %v564 = vlaneseq
        %v565 = vshrl.u32 %v564, 7
        %v566 = vsub.s32 0, %v565
        %v567 = vrot.slane %v562, %v566
        %v584 = vunpack.c.l.b16 %v518
        %v585 = vunpack.c.l.b16 %v519
        %v586 = vunpack.c.l.b16 %v520
        %v587 = vunpack.c.l.b16 %v521
        %v588 = vunpack.c.l.b16 %v522
        %v589 = vunpack.c.l.b16 %v523
        %v590 = vunpack.c.l.b16 %v524
        %v591 = vunpack.c.l.b16 %v525
        %v592 = vunpack.c.l.b16 %v526
        %v593 = vunpack.c.l.b16 %v527
        %v594 = vunpack.c.l.b16 %v528
        %v595 = vunpack.c.l.b16 %v529
        %v596 = vunpack.c.l.b16 %v530
        %v597 = vunpack.c.l.b16 %v531
        %v598 = vunpack.c.l.b16 %v532
        %v599 = vunpack.c.l.b16 %v533
        %v600 = vpack.c.b16 %v585, %v584
        %v601 = vpack.c.b16 %v587, %v586
        %v602 = vpack.c.b16 %v589, %v588
        %v603 = vpack.c.b16 %v591, %v590
        %v604 = vpack.c.b16 %v593, %v592
        %v605 = vpack.c.b16 %v595, %v594
        %v606 = vpack.c.b16 %v597, %v596
        %v607 = vpack.c.b16 %v599, %v598
        %616 = vmatprep.subr.bf16.mxu0 0
        %617 = vmatpush1.bf16.msra.mxu0 %v600
        %618 = vmatprep.subr.bf16.mxu0 0
        %619 = vmatpush1.bf16.msra.mxu0 %v601
        %620 = vmatprep.subr.bf16.mxu0 0
        %621 = vmatpush1.bf16.msra.mxu0 %v602
        %622 = vmatprep.subr.bf16.mxu0 0
        %623 = vmatpush1.bf16.msra.mxu0 %v603
        %624 = vmatprep.subr.bf16.mxu0 0
        %625 = vmatpush1.bf16.msra.mxu0 %v604
        %626 = vmatprep.subr.bf16.mxu0 0
        %627 = vmatpush1.bf16.msra.mxu0 %v605
        %628 = vmatprep.subr.bf16.mxu0 0
        %629 = vmatpush1.bf16.msra.mxu0 %v606
        %630 = vmatprep.subr.bf16.mxu0 0
        %631 = vmatpush1.bf16.msra.mxu0 %v607
        %632 = vmatprep.subr.bf16.mxu0 0
        %633 = vmatpush1.bf16.msra.mxu0 0
        %634 = vmatprep.subr.bf16.mxu0 0
        %635 = vmatpush1.bf16.msra.mxu0 0
        %636 = vmatprep.subr.bf16.mxu0 0
        %637 = vmatpush1.bf16.msra.mxu0 0
        %638 = vmatprep.subr.bf16.mxu0 0
        %639 = vmatpush1.bf16.msra.mxu0 0
        %640 = vmatprep.subr.bf16.mxu0 0
        %641 = vmatpush1.bf16.msra.mxu0 0
        %642 = vmatprep.subr.bf16.mxu0 0
        %643 = vmatpush1.bf16.msra.mxu0 0
        %644 = vmatprep.subr.bf16.mxu0 0
        %645 = vmatpush1.bf16.msra.mxu0 0
        %646 = vmatprep.subr.bf16.mxu0 0
        %647 = vmatpush1.bf16.msra.mxu0 0
        %648 = vmatprep.mubr.bf16.mxu0 0
        %649 = vmatmul.mubr.bf16.gmra.mrb[0].mxu0 %v563
        %v650 = vpop.f32.mrb[0].mxu0
        %v651 = vadd.f32 %v567, %v650
        %v652 = vpop.f32.mrb[0].mxu0
        %v653 = vpop.f32.mrb[0].mxu0
        %v654 = vpop.f32.mrb[0].mxu0
        %655 = vdwg.mxu0
        %657 = vrot.lane.b32.xlu0 %v651, 96
        %v658 = vpop.permute.xlu0 %657
        %vm659 = vcmask 130048
        %v660 = vsel %vm659, %v651, 0
        %v662 = vsel %vm659, %v658, 0
        %664 = vmatprep.subr.mxu0 0.0
        %665 = vmatpush1.xpose.msra.mxu0 %v662
        %666 = vmatprep.subr.mxu0 0.0
        %667 = vmatpush1.xpose.msra.mxu0 0.0
        %668 = vmatprep.subr.mxu0 0.0
        %669 = vmatpush1.xpose.msra.mxu0 0.0
        %670 = vmatprep.subr.mxu0 0.0
        %671 = vmatpush1.xpose.msra.mxu0 0.0
        %672 = vmatprep.subr.mxu0 0.0
        %673 = vmatpush1.xpose.msra.mxu0 0.0
        %674 = vmatprep.subr.mxu0 0.0
        %675 = vmatpush1.xpose.msra.mxu0 0.0
        %676 = vmatprep.subr.mxu0 0.0
        %677 = vmatpush1.xpose.msra.mxu0 0.0
        %678 = vmatprep.subr.mxu0 0.0
        %679 = vmatpush1.xpose.msra.mxu0 0.0
        %680 = vmatprep.subr.mxu0 0.0
        %681 = vmatpush1.xpose.msra.mxu0 0.0
        %682 = vmatprep.subr.mxu0 0.0
        %683 = vmatpush1.xpose.msra.mxu0 0.0
        %684 = vmatprep.subr.mxu0 0.0
        %685 = vmatpush1.xpose.msra.mxu0 0.0
        %686 = vmatprep.subr.mxu0 0.0
        %687 = vmatpush1.xpose.msra.mxu0 0.0
        %688 = vmatprep.subr.mxu0 0.0
        %689 = vmatpush1.xpose.msra.mxu0 0.0
        %690 = vmatprep.subr.mxu0 0.0
        %691 = vmatpush1.xpose.msra.mxu0 0.0
        %692 = vmatprep.subr.mxu0 0.0
        %693 = vmatpush1.xpose.msra.mxu0 0.0
        %694 = vmatprep.subr.mxu0 0.0
        %695 = vmatpush1.xpose.msra.mxu0 0.0
        %696 = vmatprep.subr.mxu0 0.0
        %697 = vmatpush1.xpose.msra.mxu0 0.0
        %698 = vmatprep.subr.mxu0 0.0
        %699 = vmatpush1.xpose.msra.mxu0 0.0
        %700 = vmatprep.subr.mxu0 0.0
        %701 = vmatpush1.xpose.msra.mxu0 0.0
        %702 = vmatprep.subr.mxu0 0.0
        %703 = vmatpush1.xpose.msra.mxu0 0.0
        %704 = vmatprep.subr.mxu0 0.0
        %705 = vmatpush1.xpose.msra.mxu0 0.0
        %706 = vmatprep.subr.mxu0 0.0
        %707 = vmatpush1.xpose.msra.mxu0 0.0
        %708 = vmatprep.subr.mxu0 0.0
        %709 = vmatpush1.xpose.msra.mxu0 0.0
        %710 = vmatprep.subr.mxu0 0.0
        %711 = vmatpush1.xpose.msra.mxu0 0.0
        %712 = vmatprep.subr.mxu0 0.0
        %713 = vmatpush1.xpose.msra.mxu0 0.0
        %714 = vmatprep.subr.mxu0 0.0
        %715 = vmatpush1.xpose.msra.mxu0 0.0
        %716 = vmatprep.subr.mxu0 0.0
        %717 = vmatpush1.xpose.msra.mxu0 0.0
        %718 = vmatprep.subr.mxu0 0.0
        %719 = vmatpush1.xpose.msra.mxu0 0.0
        %720 = vmatprep.subr.mxu0 0.0
        %721 = vmatpush1.xpose.msra.mxu0 0.0
        %722 = vmatprep.subr.mxu0 0.0
        %723 = vmatpush1.xpose.msra.mxu0 0.0
        %724 = vmatprep.subr.mxu0 0.0
        %725 = vmatpush1.xpose.msra.mxu0 0.0
        %726 = vmatprep.subr.mxu0 0.0
        %727 = vmatpush1.xpose.msra.mxu0 0.0
        %728 = vmatprep.mubr.f32.mxu0 0.0
        %729 = vmatmul.mubr.f32.gmra.mrb[0].mxu0 %v660
        %v730 = vpop.f32.mrb[0].mxu0
        %v731 = vadd.f32 0.0, %v730
        %v732 = vpop.f32.mrb[0].mxu0
        %733 = vdwg.mxu0
        %v734 = vmul.f32 %v731, 0.25
        %v735 = vadd.f32 %v734, %v517
        %vm736 = vcmask 64512
        %v737 = vsel %vm736, %v735, -inf
        %738 = vmax.xlane.f32.xlu0 %v737
        %v739 = vpop.xlane.xlu0 %738
        %v740 = vsub.f32 %v735, %v739
        %v741 = vmul.f32 %v740, 1.442695
        %v742 = vpow.pop %v741
        %v743 = vsel %vm736, %v742, 0.0
        %744 = vadd.xlane.f32.xlu0 %v743
        %v745 = vpop.xlane.xlu0 %744
        %v746 = vrcp.pop %v745
        %v747 = vmul.f32 %v742, %v746
        %748 = vrot.lane.b32.xlu0 %v651, 64
        %v749 = vpop.permute.xlu0 %748
        %v752 = vsel %vm736, %v747, 0
        %754 = vmatprep.subr.mxu0 0.0
        %755 = vmatpush1.msra.mxu0 %v749
        %756 = vmatprep.subr.mxu0 0.0
        %757 = vmatpush1.msra.mxu0 0.0
        %758 = vmatprep.subr.mxu0 0.0
        %759 = vmatpush1.msra.mxu0 0.0
        %760 = vmatprep.subr.mxu0 0.0
        %761 = vmatpush1.msra.mxu0 0.0
        %762 = vmatprep.subr.mxu0 0.0
        %763 = vmatpush1.msra.mxu0 0.0
        %764 = vmatprep.subr.mxu0 0.0
        %765 = vmatpush1.msra.mxu0 0.0
        %766 = vmatprep.subr.mxu0 0.0
        %767 = vmatpush1.msra.mxu0 0.0
        %768 = vmatprep.subr.mxu0 0.0
        %769 = vmatpush1.msra.mxu0 0.0
        %770 = vmatprep.subr.mxu0 0.0
        %771 = vmatpush1.msra.mxu0 0.0
        %772 = vmatprep.subr.mxu0 0.0
        %773 = vmatpush1.msra.mxu0 0.0
        %774 = vmatprep.subr.mxu0 0.0
        %775 = vmatpush1.msra.mxu0 0.0
        %776 = vmatprep.subr.mxu0 0.0
        %777 = vmatpush1.msra.mxu0 0.0
        %778 = vmatprep.subr.mxu0 0.0
        %779 = vmatpush1.msra.mxu0 0.0
        %780 = vmatprep.subr.mxu0 0.0
        %781 = vmatpush1.msra.mxu0 0.0
        %782 = vmatprep.subr.mxu0 0.0
        %783 = vmatpush1.msra.mxu0 0.0
        %784 = vmatprep.subr.mxu0 0.0
        %785 = vmatpush1.msra.mxu0 0.0
        %786 = vmatprep.subr.mxu0 0.0
        %787 = vmatpush1.msra.mxu0 0.0
        %788 = vmatprep.subr.mxu0 0.0
        %789 = vmatpush1.msra.mxu0 0.0
        %790 = vmatprep.subr.mxu0 0.0
        %791 = vmatpush1.msra.mxu0 0.0
        %792 = vmatprep.subr.mxu0 0.0
        %793 = vmatpush1.msra.mxu0 0.0
        %794 = vmatprep.subr.mxu0 0.0
        %795 = vmatpush1.msra.mxu0 0.0
        %796 = vmatprep.subr.mxu0 0.0
        %797 = vmatpush1.msra.mxu0 0.0
        %798 = vmatprep.subr.mxu0 0.0
        %799 = vmatpush1.msra.mxu0 0.0
        %800 = vmatprep.subr.mxu0 0.0
        %801 = vmatpush1.msra.mxu0 0.0
        %802 = vmatprep.subr.mxu0 0.0
        %803 = vmatpush1.msra.mxu0 0.0
        %804 = vmatprep.subr.mxu0 0.0
        %805 = vmatpush1.msra.mxu0 0.0
        %806 = vmatprep.subr.mxu0 0.0
        %807 = vmatpush1.msra.mxu0 0.0
        %808 = vmatprep.subr.mxu0 0.0
        %809 = vmatpush1.msra.mxu0 0.0
        %810 = vmatprep.subr.mxu0 0.0
        %811 = vmatpush1.msra.mxu0 0.0
        %812 = vmatprep.subr.mxu0 0.0
        %813 = vmatpush1.msra.mxu0 0.0
        %814 = vmatprep.subr.mxu0 0.0
        %815 = vmatpush1.msra.mxu0 0.0
        %816 = vmatprep.subr.mxu0 0.0
        %817 = vmatpush1.msra.mxu0 0.0
        %818 = vmatprep.mubr.f32.mxu0 0.0
        %819 = vmatmul.mubr.f32.gmra.mrb[0].mxu0 %v752
        %v820 = vpop.f32.mrb[0].mxu0
        %v821 = vadd.f32 0.0, %v820
        %v822 = vpop.f32.mrb[0].mxu0
        %823 = vdwg.mxu0
        %824 = vrot.lane.b32.xlu0 %v651, 112
        %v825 = vpop.permute.xlu0 %824
        %826 = vrot.lane.b32.xlu0 %v651, 80
        %v827 = vpop.permute.xlu0 %826
        %v828 = vsel %vm659, %v825, 0
        %v830 = vsel %vm659, %v827, 0
        %832 = vmatprep.subr.mxu0 0.0
        %833 = vmatpush1.xpose.msra.mxu0 %v830
        %834 = vmatprep.subr.mxu0 0.0
        %835 = vmatpush1.xpose.msra.mxu0 0.0
        %836 = vmatprep.subr.mxu0 0.0
        %837 = vmatpush1.xpose.msra.mxu0 0.0
        %838 = vmatprep.subr.mxu0 0.0
        %839 = vmatpush1.xpose.msra.mxu0 0.0
        %840 = vmatprep.subr.mxu0 0.0
        %841 = vmatpush1.xpose.msra.mxu0 0.0
        %842 = vmatprep.subr.mxu0 0.0
        %843 = vmatpush1.xpose.msra.mxu0 0.0
        %844 = vmatprep.subr.mxu0 0.0
        %845 = vmatpush1.xpose.msra.mxu0 0.0
        %846 = vmatprep.subr.mxu0 0.0
        %847 = vmatpush1.xpose.msra.mxu0 0.0
        %848 = vmatprep.subr.mxu0 0.0
        %849 = vmatpush1.xpose.msra.mxu0 0.0
        %850 = vmatprep.subr.mxu0 0.0
        %851 = vmatpush1.xpose.msra.mxu0 0.0
        %852 = vmatprep.subr.mxu0 0.0
        %853 = vmatpush1.xpose.msra.mxu0 0.0
        %854 = vmatprep.subr.mxu0 0.0
        %855 = vmatpush1.xpose.msra.mxu0 0.0
        %856 = vmatprep.subr.mxu0 0.0
        %857 = vmatpush1.xpose.msra.mxu0 0.0
        %858 = vmatprep.subr.mxu0 0.0
        %859 = vmatpush1.xpose.msra.mxu0 0.0
        %860 = vmatprep.subr.mxu0 0.0
        %861 = vmatpush1.xpose.msra.mxu0 0.0
        %862 = vmatprep.subr.mxu0 0.0
        %863 = vmatpush1.xpose.msra.mxu0 0.0
        %864 = vmatprep.subr.mxu0 0.0
        %865 = vmatpush1.xpose.msra.mxu0 0.0
        %866 = vmatprep.subr.mxu0 0.0
        %867 = vmatpush1.xpose.msra.mxu0 0.0
        %868 = vmatprep.subr.mxu0 0.0
        %869 = vmatpush1.xpose.msra.mxu0 0.0
        %870 = vmatprep.subr.mxu0 0.0
        %871 = vmatpush1.xpose.msra.mxu0 0.0
        %872 = vmatprep.subr.mxu0 0.0
        %873 = vmatpush1.xpose.msra.mxu0 0.0
        %874 = vmatprep.subr.mxu0 0.0
        %875 = vmatpush1.xpose.msra.mxu0 0.0
        %876 = vmatprep.subr.mxu0 0.0
        %877 = vmatpush1.xpose.msra.mxu0 0.0
        %878 = vmatprep.subr.mxu0 0.0
        %879 = vmatpush1.xpose.msra.mxu0 0.0
        %880 = vmatprep.subr.mxu0 0.0
        %881 = vmatpush1.xpose.msra.mxu0 0.0
        %882 = vmatprep.subr.mxu0 0.0
        %883 = vmatpush1.xpose.msra.mxu0 0.0
        %884 = vmatprep.subr.mxu0 0.0
        %885 = vmatpush1.xpose.msra.mxu0 0.0
        %886 = vmatprep.subr.mxu0 0.0
        %887 = vmatpush1.xpose.msra.mxu0 0.0
        %888 = vmatprep.subr.mxu0 0.0
        %889 = vmatpush1.xpose.msra.mxu0 0.0
        %890 = vmatprep.subr.mxu0 0.0
        %891 = vmatpush1.xpose.msra.mxu0 0.0
        %892 = vmatprep.subr.mxu0 0.0
        %893 = vmatpush1.xpose.msra.mxu0 0.0
        %894 = vmatprep.subr.mxu0 0.0
        %895 = vmatpush1.xpose.msra.mxu0 0.0
        %896 = vmatprep.mubr.f32.mxu0 0.0
        %897 = vmatmul.mubr.f32.gmra.mrb[0].mxu0 %v828
        %v898 = vpop.f32.mrb[0].mxu0
        %v899 = vadd.f32 0.0, %v898
        %v900 = vpop.f32.mrb[0].mxu0
        %901 = vdwg.mxu0
        %v902 = vmul.f32 %v899, 0.25
        %v903 = vadd.f32 %v902, %v517
        %v904 = vsel %vm736, %v903, -inf
        %905 = vmax.xlane.f32.xlu0 %v904
        %v906 = vpop.xlane.xlu0 %905
        %v907 = vsub.f32 %v903, %v906
        %v908 = vmul.f32 %v907, 1.442695
        %v909 = vpow.pop %v908
        %v910 = vsel %vm736, %v909, 0.0
        %911 = vadd.xlane.f32.xlu0 %v910
        %v912 = vpop.xlane.xlu0 %911
        %v913 = vrcp.pop %v912
        %v914 = vmul.f32 %v909, %v913
        %915 = vrot.lane.b32.xlu0 %v651, 48
        %v916 = vpop.permute.xlu0 %915
        %v919 = vsel %vm736, %v914, 0
        %921 = vmatprep.subr.mxu0 0.0
        %922 = vmatpush1.msra.mxu0 %v916
        %923 = vmatprep.subr.mxu0 0.0
        %924 = vmatpush1.msra.mxu0 0.0
        %925 = vmatprep.subr.mxu0 0.0
        %926 = vmatpush1.msra.mxu0 0.0
        %927 = vmatprep.subr.mxu0 0.0
        %928 = vmatpush1.msra.mxu0 0.0
        %929 = vmatprep.subr.mxu0 0.0
        %930 = vmatpush1.msra.mxu0 0.0
        %931 = vmatprep.subr.mxu0 0.0
        %932 = vmatpush1.msra.mxu0 0.0
        %933 = vmatprep.subr.mxu0 0.0
        %934 = vmatpush1.msra.mxu0 0.0
        %935 = vmatprep.subr.mxu0 0.0
        %936 = vmatpush1.msra.mxu0 0.0
        %937 = vmatprep.subr.mxu0 0.0
        %938 = vmatpush1.msra.mxu0 0.0
        %939 = vmatprep.subr.mxu0 0.0
        %940 = vmatpush1.msra.mxu0 0.0
        %941 = vmatprep.subr.mxu0 0.0
        %942 = vmatpush1.msra.mxu0 0.0
        %943 = vmatprep.subr.mxu0 0.0
        %944 = vmatpush1.msra.mxu0 0.0
        %945 = vmatprep.subr.mxu0 0.0
        %946 = vmatpush1.msra.mxu0 0.0
        %947 = vmatprep.subr.mxu0 0.0
        %948 = vmatpush1.msra.mxu0 0.0
        %949 = vmatprep.subr.mxu0 0.0
        %950 = vmatpush1.msra.mxu0 0.0
        %951 = vmatprep.subr.mxu0 0.0
        %952 = vmatpush1.msra.mxu0 0.0
        %953 = vmatprep.subr.mxu0 0.0
        %954 = vmatpush1.msra.mxu0 0.0
        %955 = vmatprep.subr.mxu0 0.0
        %956 = vmatpush1.msra.mxu0 0.0
        %957 = vmatprep.subr.mxu0 0.0
        %958 = vmatpush1.msra.mxu0 0.0
        %959 = vmatprep.subr.mxu0 0.0
        %960 = vmatpush1.msra.mxu0 0.0
        %961 = vmatprep.subr.mxu0 0.0
        %962 = vmatpush1.msra.mxu0 0.0
        %963 = vmatprep.subr.mxu0 0.0
        %964 = vmatpush1.msra.mxu0 0.0
        %965 = vmatprep.subr.mxu0 0.0
        %966 = vmatpush1.msra.mxu0 0.0
        %967 = vmatprep.subr.mxu0 0.0
        %968 = vmatpush1.msra.mxu0 0.0
        %969 = vmatprep.subr.mxu0 0.0
        %970 = vmatpush1.msra.mxu0 0.0
        %971 = vmatprep.subr.mxu0 0.0
        %972 = vmatpush1.msra.mxu0 0.0
        %973 = vmatprep.subr.mxu0 0.0
        %974 = vmatpush1.msra.mxu0 0.0
        %975 = vmatprep.subr.mxu0 0.0
        %976 = vmatpush1.msra.mxu0 0.0
        %977 = vmatprep.subr.mxu0 0.0
        %978 = vmatpush1.msra.mxu0 0.0
        %979 = vmatprep.subr.mxu0 0.0
        %980 = vmatpush1.msra.mxu0 0.0
        %981 = vmatprep.subr.mxu0 0.0
        %982 = vmatpush1.msra.mxu0 0.0
        %983 = vmatprep.subr.mxu0 0.0
        %984 = vmatpush1.msra.mxu0 0.0
        %985 = vmatprep.mubr.f32.mxu0 0.0
        %986 = vmatmul.mubr.f32.gmra.mrb[0].mxu0 %v919
        %v987 = vpop.f32.mrb[0].mxu0
        %v988 = vadd.f32 0.0, %v987
        %v989 = vpop.f32.mrb[0].mxu0
        %990 = vdwg.mxu0
        %992 = vrot.lane.b32.xlu0 %v988, 16
        %v993 = vpop.permute.xlu0 %992
        %v995 = vsel %vm659, %v821, %v993
        %v996 = vpack.c.bf16 %v995, %v995
        %v997 = vlaneseq
        %v998 = vshrl.u32 %v997, 7
        %v999 = vsub.s32 1, %v998
        %v1000 = vrot.slane %v562, %v999
        %v1005 = vunpack.c.l.b16 %v534
        %v1006 = vunpack.c.l.b16 %v535
        %v1007 = vunpack.c.l.b16 %v536
        %v1008 = vunpack.c.l.b16 %v537
        %v1009 = vpack.c.b16 %v1006, %v1005
        %v1010 = vpack.c.b16 %v1008, %v1007
        %vm1013 = vcmask 261120
        %v1015 = vsel %vm1013, %v996, 0
        %1017 = vmatprep.subr.bf16.mxu0 0
        %1018 = vmatpush1.bf16.msra.mxu0 %v1009
        %1019 = vmatprep.subr.bf16.mxu0 0
        %1020 = vmatpush1.bf16.msra.mxu0 %v1010
        %1021 = vmatprep.subr.bf16.mxu0 0
        %1022 = vmatpush1.bf16.msra.mxu0 0
        %1023 = vmatprep.subr.bf16.mxu0 0
        %1024 = vmatpush1.bf16.msra.mxu0 0
        %1025 = vmatprep.subr.bf16.mxu0 0
        %1026 = vmatpush1.bf16.msra.mxu0 0
        %1027 = vmatprep.subr.bf16.mxu0 0
        %1028 = vmatpush1.bf16.msra.mxu0 0
        %1029 = vmatprep.subr.bf16.mxu0 0
        %1030 = vmatpush1.bf16.msra.mxu0 0
        %1031 = vmatprep.subr.bf16.mxu0 0
        %1032 = vmatpush1.bf16.msra.mxu0 0
        %1033 = vmatprep.subr.bf16.mxu0 0
        %1034 = vmatpush1.bf16.msra.mxu0 0
        %1035 = vmatprep.subr.bf16.mxu0 0
        %1036 = vmatpush1.bf16.msra.mxu0 0
        %1037 = vmatprep.subr.bf16.mxu0 0
        %1038 = vmatpush1.bf16.msra.mxu0 0
        %1039 = vmatprep.subr.bf16.mxu0 0
        %1040 = vmatpush1.bf16.msra.mxu0 0
        %1041 = vmatprep.subr.bf16.mxu0 0
        %1042 = vmatpush1.bf16.msra.mxu0 0
        %1043 = vmatprep.subr.bf16.mxu0 0
        %1044 = vmatpush1.bf16.msra.mxu0 0
        %1045 = vmatprep.subr.bf16.mxu0 0
        %1046 = vmatpush1.bf16.msra.mxu0 0
        %1047 = vmatprep.subr.bf16.mxu0 0
        %1048 = vmatpush1.bf16.msra.mxu0 0
        %1049 = vmatprep.mubr.bf16.mxu0 0
        %1050 = vmatmul.mubr.bf16.gmra.mrb[0].mxu0 %v1015
        %v1051 = vpop.f32.mrb[0].mxu0
        %v1052 = vadd.f32 %v1000, %v1051
        %v1053 = vpop.f32.mrb[0].mxu0
        %v1054 = vpop.f32.mrb[0].mxu0
        %v1055 = vpop.f32.mrb[0].mxu0
        %1056 = vdwg.mxu0
        %v1057 = vadd.f32 %v508, %v1052
        %1058 = vadd.xlane.f32.xlu0 %v1057
        %v1059 = vpop.xlane.xlu0 %1058
        %v1060 = vmul.f32 %v1059, 0.03125
        %v1061 = vsub.f32 %v1057, %v1060
        %v1062 = vmul.f32 %v1061, %v478
        %v1063 = vmul.f32 %v1062, %v1062
        %1064 = vadd.xlane.f32.xlu0 %v1063
        %v1065 = vpop.xlane.xlu0 %1064
        %v1066 = vmul.f32 %v1065, 0.03125
        %v1067 = vadd.f32 %v1066, 1e-12
        %v1068 = vrsqrt.pop %v1067
        %v1069 = vmul.f32 %v1062, %v1068
        %v1070 = vlaneseq
        %v1071 = vshrl.u32 %v1070, 7
        %v1072 = vsub.s32 2, %v1071
        %v1073 = vrot.slane %v562, %v1072
        %v1074 = vmul.f32 %v1069, %v1073
        %v1075 = vlaneseq
        %v1076 = vshrl.u32 %v1075, 7
        %v1077 = vsub.s32 3, %v1076
        %v1078 = vrot.slane %v562, %v1077
        %v1079 = vadd.f32 %v1074, %v1078
        %v1080 = vpack.c.bf16 %v1079, %v1079
        %v1081 = vlaneseq
        %v1082 = vshrl.u32 %v1081, 7
        %v1083 = vsub.s32 4, %v1082
        %v1084 = vrot.slane %v562, %v1083
        %v1101 = vunpack.c.l.b16 %v538
        %v1102 = vunpack.c.l.b16 %v539
        %v1103 = vunpack.c.l.b16 %v540
        %v1104 = vunpack.c.l.b16 %v541
        %v1105 = vunpack.c.l.b16 %v542
        %v1106 = vunpack.c.l.b16 %v543
        %v1107 = vunpack.c.l.b16 %v544
        %v1108 = vunpack.c.l.b16 %v545
        %v1109 = vunpack.c.l.b16 %v546
        %v1110 = vunpack.c.l.b16 %v547
        %v1111 = vunpack.c.l.b16 %v548
        %v1112 = vunpack.c.l.b16 %v549
        %v1113 = vunpack.c.l.b16 %v550
        %v1114 = vunpack.c.l.b16 %v551
        %v1115 = vunpack.c.l.b16 %v552
        %v1116 = vunpack.c.l.b16 %v553
        %v1117 = vpack.c.b16 %v1102, %v1101
        %v1118 = vpack.c.b16 %v1104, %v1103
        %v1119 = vpack.c.b16 %v1106, %v1105
        %v1120 = vpack.c.b16 %v1108, %v1107
        %v1121 = vpack.c.b16 %v1110, %v1109
        %v1122 = vpack.c.b16 %v1112, %v1111
        %v1123 = vpack.c.b16 %v1114, %v1113
        %v1124 = vpack.c.b16 %v1116, %v1115
        %1133 = vmatprep.subr.bf16.mxu0 0
        %1134 = vmatpush1.bf16.msra.mxu0 %v1117
        %1135 = vmatprep.subr.bf16.mxu0 0
        %1136 = vmatpush1.bf16.msra.mxu0 %v1118
        %1137 = vmatprep.subr.bf16.mxu0 0
        %1138 = vmatpush1.bf16.msra.mxu0 %v1119
        %1139 = vmatprep.subr.bf16.mxu0 0
        %1140 = vmatpush1.bf16.msra.mxu0 %v1120
        %1141 = vmatprep.subr.bf16.mxu0 0
        %1142 = vmatpush1.bf16.msra.mxu0 %v1121
        %1143 = vmatprep.subr.bf16.mxu0 0
        %1144 = vmatpush1.bf16.msra.mxu0 %v1122
        %1145 = vmatprep.subr.bf16.mxu0 0
        %1146 = vmatpush1.bf16.msra.mxu0 %v1123
        %1147 = vmatprep.subr.bf16.mxu0 0
        %1148 = vmatpush1.bf16.msra.mxu0 %v1124
        %1149 = vmatprep.subr.bf16.mxu0 0
        %1150 = vmatpush1.bf16.msra.mxu0 0
        %1151 = vmatprep.subr.bf16.mxu0 0
        %1152 = vmatpush1.bf16.msra.mxu0 0
        %1153 = vmatprep.subr.bf16.mxu0 0
        %1154 = vmatpush1.bf16.msra.mxu0 0
        %1155 = vmatprep.subr.bf16.mxu0 0
        %1156 = vmatpush1.bf16.msra.mxu0 0
        %1157 = vmatprep.subr.bf16.mxu0 0
        %1158 = vmatpush1.bf16.msra.mxu0 0
        %1159 = vmatprep.subr.bf16.mxu0 0
        %1160 = vmatpush1.bf16.msra.mxu0 0
        %1161 = vmatprep.subr.bf16.mxu0 0
        %1162 = vmatpush1.bf16.msra.mxu0 0
        %1163 = vmatprep.subr.bf16.mxu0 0
        %1164 = vmatpush1.bf16.msra.mxu0 0
        %1165 = vmatprep.mubr.bf16.mxu0 0
        %1166 = vmatmul.mubr.bf16.gmra.mrb[0].mxu0 %v1080
        %v1167 = vpop.f32.mrb[0].mxu0
        %v1168 = vadd.f32 %v1084, %v1167
        %v1169 = vpop.f32.mrb[0].mxu0
        %v1170 = vpop.f32.mrb[0].mxu0
        %v1171 = vpop.f32.mrb[0].mxu0
        %1172 = vdwg.mxu0
        %v1173 = vmul.f32 %v1168, %v1168
        %v1174 = vmul.f32 %v1168, %v1173
        %v1175 = vmul.f32 %v1174, 0.044715
        %v1176 = vadd.f32 %v1168, %v1175
        %v1177 = vmul.f32 %v1176, 0.7978846
        %v1178 = vtanh.pop %v1177
        %v1179 = vadd.f32 %v1178, 1.0
        %v1180 = vmul.f32 %v1179, 0.5
        %v1181 = vmul.f32 %v1168, %v1180
        %v1182 = vpack.c.bf16 %v1181, %v1181
        %v1183 = vlaneseq
        %v1184 = vshrl.u32 %v1183, 7
        %v1185 = vsub.s32 5, %v1184
        %v1186 = vrot.slane %v562, %v1185
        %v1195 = vunpack.c.l.b16 %v554
        %v1196 = vunpack.c.l.b16 %v555
        %v1197 = vunpack.c.l.b16 %v556
        %v1198 = vunpack.c.l.b16 %v557
        %v1199 = vunpack.c.l.b16 %v558
        %v1200 = vunpack.c.l.b16 %v559
        %v1201 = vunpack.c.l.b16 %v560
        %v1202 = vunpack.c.l.b16 %v561
        %v1203 = vpack.c.b16 %v1196, %v1195
        %v1204 = vpack.c.b16 %v1198, %v1197
        %v1205 = vpack.c.b16 %v1200, %v1199
        %v1206 = vpack.c.b16 %v1202, %v1201
        %vm1211 = vcmask 523264
        %v1213 = vsel %vm1211, %v1182, 0
        %1215 = vmatprep.subr.bf16.mxu0 0
        %1216 = vmatpush1.bf16.msra.mxu0 %v1203
        %1217 = vmatprep.subr.bf16.mxu0 0
        %1218 = vmatpush1.bf16.msra.mxu0 %v1204
        %1219 = vmatprep.subr.bf16.mxu0 0
        %1220 = vmatpush1.bf16.msra.mxu0 %v1205
        %1221 = vmatprep.subr.bf16.mxu0 0
        %1222 = vmatpush1.bf16.msra.mxu0 %v1206
        %1223 = vmatprep.subr.bf16.mxu0 0
        %1224 = vmatpush1.bf16.msra.mxu0 0
        %1225 = vmatprep.subr.bf16.mxu0 0
        %1226 = vmatpush1.bf16.msra.mxu0 0
        %1227 = vmatprep.subr.bf16.mxu0 0
        %1228 = vmatpush1.bf16.msra.mxu0 0
        %1229 = vmatprep.subr.bf16.mxu0 0
        %1230 = vmatpush1.bf16.msra.mxu0 0
        %1231 = vmatprep.subr.bf16.mxu0 0
        %1232 = vmatpush1.bf16.msra.mxu0 0
        %1233 = vmatprep.subr.bf16.mxu0 0
        %1234 = vmatpush1.bf16.msra.mxu0 0
        %1235 = vmatprep.subr.bf16.mxu0 0
        %1236 = vmatpush1.bf16.msra.mxu0 0
        %1237 = vmatprep.subr.bf16.mxu0 0
        %1238 = vmatpush1.bf16.msra.mxu0 0
        %1239 = vmatprep.subr.bf16.mxu0 0
        %1240 = vmatpush1.bf16.msra.mxu0 0
        %1241 = vmatprep.subr.bf16.mxu0 0
        %1242 = vmatpush1.bf16.msra.mxu0 0
        %1243 = vmatprep.subr.bf16.mxu0 0
        %1244 = vmatpush1.bf16.msra.mxu0 0
        %1245 = vmatprep.subr.bf16.mxu0 0
        %1246 = vmatpush1.bf16.msra.mxu0 0
        %1247 = vmatprep.mubr.bf16.mxu0 0
        %1248 = vmatmul.mubr.bf16.gmra.mrb[0].mxu0 %v1213
        %v1249 = vpop.f32.mrb[0].mxu0
        %v1250 = vadd.f32 %v1186, %v1249
        %v1251 = vpop.f32.mrb[0].mxu0
        %v1252 = vpop.f32.mrb[0].mxu0
        %v1253 = vpop.f32.mrb[0].mxu0
        %1254 = vdwg.mxu0
        %v1255 = vadd.f32 %v1079, %v1250
        %1256 = vadd.xlane.f32.xlu0 %v1255
        %v1257 = vpop.xlane.xlu0 %1256
        %v1258 = vmul.f32 %v1257, 0.03125
        %v1259 = vsub.f32 %v1255, %v1258
        %v1260 = vmul.f32 %v1259, %v478
        %v1261 = vmul.f32 %v1260, %v1260
        %1262 = vadd.xlane.f32.xlu0 %v1261
        %v1263 = vpop.xlane.xlu0 %1262
        %v1264 = vmul.f32 %v1263, 0.03125
        %v1265 = vadd.f32 %v1264, 1e-12
        %v1266 = vrsqrt.pop %v1265
        %v1267 = vmul.f32 %v1260, %v1266
        %v1268 = vlaneseq
        %v1269 = vshrl.u32 %v1268, 7
        %v1270 = vsub.s32 6, %v1269
        %v1271 = vrot.slane %v562, %v1270
        %v1272 = vmul.f32 %v1267, %v1271
        %v1273 = vlaneseq
        %v1274 = vshrl.u32 %v1273, 7
        %v1275 = vsub.s32 7, %v1274
        %v1276 = vrot.slane %v562, %v1275
        %v1277 = vadd.f32 %v1272, %v1276
        %1278 = vst [vmem:[#allocation2] sm:$0xff] %v1277
        %p1279 = scmp.eq.s32.totalorder %s31, 1
        // Predicated region
        $region69: #{tpu_custom_call.1} parent=51 // pred_check
          %p1280 = pneg %p1279
        $region70: #{tpu_custom_call.1} parent=51 // pred_check_branch
          %1282 = sbr.rel (%p1280) target = $region72
        $region71: #{tpu_custom_call.1} parent=51 // pred_region
          %vm1283 = vcmask 57344
          %v1284 = vsel %vm1283, %v509, 0.0
          %1285 = vadd.xlane.f32.xlu0 %v1284
          %v1286 = vpop.xlane.xlu0 %1285
          %v1287 = vmax.f32 %v1286, 1e-09
          %v1288 = vrcp.pop %v1287
          %v1289 = vmul.f32 1.0, %v1288
          %v1290 = vmul.f32 %v509, %v1289
          %v1292 = vsel %vm736, %v1290, 0
          %1294 = vmatprep.subr.mxu0 0.0
          %1295 = vmatpush1.msra.mxu0 %v1277
          %1296 = vmatprep.subr.mxu0 0.0
          %1297 = vmatpush1.msra.mxu0 0.0
          %1298 = vmatprep.subr.mxu0 0.0
          %1299 = vmatpush1.msra.mxu0 0.0
          %1300 = vmatprep.subr.mxu0 0.0
          %1301 = vmatpush1.msra.mxu0 0.0
          %1302 = vmatprep.subr.mxu0 0.0
          %1303 = vmatpush1.msra.mxu0 0.0
          %1304 = vmatprep.subr.mxu0 0.0
          %1305 = vmatpush1.msra.mxu0 0.0
          %1306 = vmatprep.subr.mxu0 0.0
          %1307 = vmatpush1.msra.mxu0 0.0
          %1308 = vmatprep.subr.mxu0 0.0
          %1309 = vmatpush1.msra.mxu0 0.0
          %1310 = vmatprep.subr.mxu0 0.0
          %1311 = vmatpush1.msra.mxu0 0.0
          %1312 = vmatprep.subr.mxu0 0.0
          %1313 = vmatpush1.msra.mxu0 0.0
          %1314 = vmatprep.subr.mxu0 0.0
          %1315 = vmatpush1.msra.mxu0 0.0
          %1316 = vmatprep.subr.mxu0 0.0
          %1317 = vmatpush1.msra.mxu0 0.0
          %1318 = vmatprep.subr.mxu0 0.0
          %1319 = vmatpush1.msra.mxu0 0.0
          %1320 = vmatprep.subr.mxu0 0.0
          %1321 = vmatpush1.msra.mxu0 0.0
          %1322 = vmatprep.subr.mxu0 0.0
          %1323 = vmatpush1.msra.mxu0 0.0
          %1324 = vmatprep.subr.mxu0 0.0
          %1325 = vmatpush1.msra.mxu0 0.0
          %1326 = vmatprep.subr.mxu0 0.0
          %1327 = vmatpush1.msra.mxu0 0.0
          %1328 = vmatprep.subr.mxu0 0.0
          %1329 = vmatpush1.msra.mxu0 0.0
          %1330 = vmatprep.subr.mxu0 0.0
          %1331 = vmatpush1.msra.mxu0 0.0
          %1332 = vmatprep.subr.mxu0 0.0
          %1333 = vmatpush1.msra.mxu0 0.0
          %1334 = vmatprep.subr.mxu0 0.0
          %1335 = vmatpush1.msra.mxu0 0.0
          %1336 = vmatprep.subr.mxu0 0.0
          %1337 = vmatpush1.msra.mxu0 0.0
          %1338 = vmatprep.subr.mxu0 0.0
          %1339 = vmatpush1.msra.mxu0 0.0
          %1340 = vmatprep.subr.mxu0 0.0
          %1341 = vmatpush1.msra.mxu0 0.0
          %1342 = vmatprep.subr.mxu0 0.0
          %1343 = vmatpush1.msra.mxu0 0.0
          %1344 = vmatprep.subr.mxu0 0.0
          %1345 = vmatpush1.msra.mxu0 0.0
          %1346 = vmatprep.subr.mxu0 0.0
          %1347 = vmatpush1.msra.mxu0 0.0
          %1348 = vmatprep.subr.mxu0 0.0
          %1349 = vmatpush1.msra.mxu0 0.0
          %1350 = vmatprep.subr.mxu0 0.0
          %1351 = vmatpush1.msra.mxu0 0.0
          %1352 = vmatprep.subr.mxu0 0.0
          %1353 = vmatpush1.msra.mxu0 0.0
          %1354 = vmatprep.subr.mxu0 0.0
          %1355 = vmatpush1.msra.mxu0 0.0
          %1356 = vmatprep.subr.mxu0 0.0
          %1357 = vmatpush1.msra.mxu0 0.0
          %1358 = vmatprep.mubr.f32.mxu0 0.0
          %1359 = vmatmul.mubr.f32.gmra.mrb[0].mxu0 %v1292
          %v1360 = vpop.f32.mrb[0].mxu0
          %v1361 = vadd.f32 0.0, %v1360
          %v1362 = vpop.f32.mrb[0].mxu0
          %1363 = vdwg.mxu0
          %1364 = vst [vmem:[%s450] sm:$0x1] %v1361
        $region72: #{tpu_custom_call.1} parent=51 // pred_fallthru
          _
        %s1365 = sand.u32 %s249, 1
        %s1366 = scalar_lea.sflag [#allocation5], %s1365
        %s1367 = sand.u32 %s249, 1
        %s1368 = scalar_lea.vmem [#allocation9], %s1367
        // Predicated region
        $region73: #{tpu_custom_call.1} parent=51 // pred_check
          %p1369 = pneg %p259
        $region74: #{tpu_custom_call.1} parent=51 // pred_check_branch
          %1371 = sbr.rel (%p1369) target = $region76
        $region75: #{tpu_custom_call.1} parent=51 // pred_region
          %s1373 = ssub.s32 16, 16
          %1374 = vsyncadd %s1366, %s1373
          %s1375 = smul.addr %s30, 16
          %s1376 = scalar_lea.hbm %s8, %s1375
          %s1378 = sshll.u32 %s1368, 4
          %s1379 = int_to_ptr.vmem [resolvable:$true] %s1378
          %1381 = dma.vmem_to_hbm [thread:$0]  %s1379, 16, %s1376, %s1366
        $region76: #{tpu_custom_call.1} parent=51 // pred_fallthru
          _
      $region52: #{tpu_custom_call.1} parent=5 // pred_fallthru
        _
      %p1382 = scmp.le.s32.totalorder 2, %s21
      // Predicated region
      $region77: #{tpu_custom_call.1} parent=5 // pred_check
        %p1383 = pneg %p1382
      $region78: #{tpu_custom_call.1} parent=5 // pred_check_branch
        %1385 = sbr.rel (%p1383) target = $region80
      $region79: #{tpu_custom_call.1} parent=5 // pred_region
        %s1386 = ssub.s32 %s21, 2
        // Predicated region
        $region81: #{tpu_custom_call.1} parent=79 // pred_check
          %p1387 = pneg %p265
        $region82: #{tpu_custom_call.1} parent=79 // pred_check_branch
          %1389 = sbr.rel (%p1387) target = $region84
        $region83: #{tpu_custom_call.1} parent=79 // pred_region
          %s1390 = sand.u32 %s250, 1
          %s1391 = scalar_lea.sflag [#allocation5], %s1390
          %s1392 = sand.u32 %s250, 1
          %s1393 = scalar_lea.vmem [#allocation9], %s1392
          %1394 = dma.done %s1391, 16
        $region84: #{tpu_custom_call.1} parent=79 // pred_fallthru
          _
      $region80: #{tpu_custom_call.1} parent=5 // pred_fallthru
        _
    $region6: #{tpu_custom_call.1} parent=1 // loop_footer
      %s25 = sadd.s32 1, %s21
    $region7: #{tpu_custom_call.1} parent=1 // loop_footer_branch
      %20 = sbr.rel target = $region3
    $region8: #{tpu_custom_call.1} parent=1 // loop_exit
      _
    %1395 = vsyncpa [#allocation4], 1
    %s1396 = scalar_lea.sflag [#allocation4], 1
    %1397 = vsyncpa %s1396, 1
    %1398 = vsyncpa [#allocation7], 1
    %1399 = vsyncpa [#allocation5], 1
    %s1400 = scalar_lea.sflag [#allocation5], 1
    %1401 = vsyncpa %s1400, 1

</llo_original>
